<compile_context>
chip_gen: v5e
topology: v5e:2x2
jax: 0.10.0
libtpu: 0.0.40
codegen_flags: <defaults>
</compile_context>

<pallas_src>
import jax
import jax.numpy as jnp
from jax.experimental import pallas as pl
from jax.experimental.pallas import tpu as pltpu


# Layer widths of the PyTorch module: input_size -> 512 -> 256 -> 128 -> 64 -> 32 -> 1
HIDDEN = (512, 256, 128, 64, 32, 1)


def _mlp_kernel(x_ref,
                w1, b1, w2, b2, w3, b3, w4, b4, w5, b5, w6, b6,
                o_ref):
    """Fused forward for one batch tile. All weights + activations live in VMEM.

    Weights may be bf16 (default) or f32; every dot accumulates in f32 on the MXU
    and the bias-add / ReLU run in f32 on the VPU. The final 32->1 projection is
    done as a VPU multiply + lane reduction (w6 arrives pre-transposed as (1,32)).
    """

    def layer(h, w_ref, b_ref):
        y = jnp.dot(h.astype(w_ref.dtype), w_ref[...],
                    preferred_element_type=jnp.float32)
        return jnp.maximum(y + b_ref[...], 0.0)

    h = x_ref[...]
    h = layer(h, w1, b1)     # in ->512, ReLU
    h = layer(h, w2, b2)     # 512->256, ReLU
    h = layer(h, w3, b3)     # 256->128, ReLU
    h = layer(h, w4, b4)     # 128-> 64, ReLU
    h = layer(h, w5, b5)     #  64-> 32, ReLU
    # fc6 (32 -> 1): VPU mul + XLU lane-reduce instead of an N=1 MXU dot.
    y = jnp.sum(h * w6[...].astype(jnp.float32), axis=-1, keepdims=True) + b6[...]
    o_ref[...] = y.astype(o_ref.dtype)


def _choose_batch_tile(batch, *, max_tile=2048):
    """>= 2 parallel grid steps for B >= 256 (v7x megacore); tile multiple of 128."""
    if batch <= 128:
        return 128
    half = -(-batch // 2)                 # ceil(B/2)
    tile = -(-half // 128) * 128          # round up to a multiple of 128
    return int(min(max_tile, tile))


def prepare_params(params, *, use_bf16=True):
    """One-time cast/layout of params (hoisted out of the per-call hot path).

    params: list of (W_(in,out) f32, b_(1,out) f32).
    Returns a list with weights in compute dtype (bf16 default), biases in f32,
    and the LAST weight stored transposed as a (1, 32) row for the VPU tail.
    """
    compute_dtype = jnp.bfloat16 if use_bf16 else jnp.float32
    prepped = []
    n = len(params)
    for idx, (w, b) in enumerate(params):
        if idx == n - 1:
            w = w.T                       # (32,1) -> (1,32) row
        prepped.append((w.astype(compute_dtype), b.astype(jnp.float32)))
    return prepped


def mlp_forward(x, prepped_params, *, batch_tile=None, vmem_limit_bytes=None):
    """x: (B, input_size) f32. prepped_params: output of prepare_params()."""
    B, in_dim = x.shape
    out_dim = prepped_params[-1][1].shape[1]     # bias (1, out) -> 1
    compute_dtype = prepped_params[0][0].dtype

    if batch_tile is None:
        batch_tile = _choose_batch_tile(B)
    # Keep sublane alignment (16 also covers bf16-packed inputs).
    batch_tile = max(16, -(-int(batch_tile) // 16) * 16)

    n_tiles = pl.cdiv(B, batch_tile)
    b_pad = n_tiles * batch_tile
    if b_pad != B:
        x = jnp.pad(x, ((0, b_pad - B), (0, 0)))

    x_in = x.astype(compute_dtype)

    flat_params = []
    param_specs = []
    param_bytes = 0
    macs_per_row = 0
    for (w, b) in prepped_params:
        flat_params += [w, b]
        param_specs += [
            pl.BlockSpec(w.shape, lambda i: (0, 0)),   # full block, reused each step
            pl.BlockSpec(b.shape, lambda i: (0, 0)),
        ]
        param_bytes += w.size * w.dtype.itemsize + b.size * b.dtype.itemsize
        macs_per_row += int(w.shape[0] * w.shape[1])

    # Large tiles only: raise scoped VMEM (v5e default is 16 MiB) without
    # exceeding v7x's 64 MiB physical budget.
    if vmem_limit_bytes is None and batch_tile >= 2048:
        vmem_limit_bytes = 48 << 20

    cost = pl.CostEstimate(
        flops=2 * macs_per_row * b_pad,
        transcendentals=0,
        bytes_accessed=int(b_pad * in_dim * x_in.dtype.itemsize
                           + b_pad * out_dim * 4
                           + param_bytes),
    )

    out = pl.pallas_call(
        _mlp_kernel,
        out_shape=jax.ShapeDtypeStruct((b_pad, out_dim), jnp.float32),
        grid_spec=pltpu.PrefetchScalarGridSpec(
            num_scalar_prefetch=0,
            grid=(n_tiles,),
            in_specs=[pl.BlockSpec((batch_tile, in_dim), lambda i: (i, 0))]
                     + param_specs,
            out_specs=pl.BlockSpec((batch_tile, out_dim), lambda i: (i, 0)),
        ),
        compiler_params=pltpu.CompilerParams(
            dimension_semantics=("parallel",),
            vmem_limit_bytes=vmem_limit_bytes,
        ),
        cost_estimate=cost,
    )(x_in, *flat_params)

    return out[:B] if b_pad != B else out


def init_params(key, input_size):
    """Deterministic init mirroring nn.Linear's U(-1/sqrt(fan_in), 1/sqrt(fan_in)).
    Weights returned already transposed to (in, out); biases as (1, out)."""
    dims = (input_size,) + HIDDEN
    params = []
    for i in range(len(HIDDEN)):
        fan_in, fan_out = dims[i], dims[i + 1]
        key, kw, kb = jax.random.split(key, 3)
        bound = 1.0 / jnp.sqrt(jnp.float32(fan_in))
        w = jax.random.uniform(kw, (fan_in, fan_out), jnp.float32, -bound, bound)
        b = jax.random.uniform(kb, (1, fan_out), jnp.float32, -bound, bound)
        params.append((w, b))
    return params


def mlp_reference(x, params):
    with jax.default_matmul_precision("highest"):
        h = x
        for idx, (w, b) in enumerate(params):
            h = h @ w + b
            if idx < len(params) - 1:
                h = jnp.maximum(h, 0.0)
        return h


if __name__ == "__main__":
    key = jax.random.PRNGKey(0)
    input_size = 32
    k_params, k_x = jax.random.split(key)
    params = init_params(k_params, input_size)

    batch = 256
    x = jax.random.normal(k_x, (batch, input_size), jnp.float32)
    ref = mlp_reference(x, params)

    # (1) Default bf16 MXU feed, auto tile (128 -> 2 "parallel" steps for v7x).
    params_bf16 = prepare_params(params, use_bf16=True)     # cast once, reuse
    out = jax.block_until_ready(mlp_forward(x, params_bf16))
    assert out.shape == (batch, 1), out.shape
    assert jnp.allclose(out, ref, atol=1e-1, rtol=1e-1), \
        "bf16 kernel diverged too far from f32 reference"

    # (2) f32 path for a tight numerical check (explicit tile, single step).
    params_f32 = prepare_params(params, use_bf16=False)
    out_f32 = jax.block_until_ready(mlp_forward(x, params_f32, batch_tile=256))
    assert out_f32.shape == (batch, 1), out_f32.shape
    assert jnp.allclose(out_f32, ref, atol=5e-4, rtol=5e-4), \
        "f32 kernel mismatch vs reference"

    # (3) Non-tile-multiple batch (padded internally, sliced on return).
    x_small = x[:200]
    out_small = jax.block_until_ready(mlp_forward(x_small, params_f32))
    assert out_small.shape == (200, 1), out_small.shape
    assert jnp.allclose(out_small, ref[:200], atol=5e-4, rtol=5e-4), \
        "padded-batch kernel mismatch vs reference"

    # TODO(synk): l2_regularization() is a training-time loss term, not part of the
    # forward pass; not implemented as a kernel.
    print("KERNEL_OK")
</pallas_src>

<mosaic_0001>
module attributes {stable_mosaic.version = 11 : i64} {
  func.func @_mlp_kernel(%arg0: i32, %arg1: memref<128x32xbf16, #tpu.memory_space<vmem>>, %arg2: memref<32x512xbf16, #tpu.memory_space<vmem>>, %arg3: memref<1x512xf32, #tpu.memory_space<vmem>>, %arg4: memref<512x256xbf16, #tpu.memory_space<vmem>>, %arg5: memref<1x256xf32, #tpu.memory_space<vmem>>, %arg6: memref<256x128xbf16, #tpu.memory_space<vmem>>, %arg7: memref<1x128xf32, #tpu.memory_space<vmem>>, %arg8: memref<128x64xbf16, #tpu.memory_space<vmem>>, %arg9: memref<1x64xf32, #tpu.memory_space<vmem>>, %arg10: memref<64x32xbf16, #tpu.memory_space<vmem>>, %arg11: memref<1x32xf32, #tpu.memory_space<vmem>>, %arg12: memref<1x32xbf16, #tpu.memory_space<vmem>>, %arg13: memref<1x1xf32, #tpu.memory_space<vmem>>, %arg14: memref<128x1xf32, #tpu.memory_space<vmem>>) attributes {dimension_semantics = [#tpu.dimension_semantics<parallel>], iteration_bounds = array<i64: 2>, scalar_prefetch = 0 : i64, scratch_operands = 0 : i64, tpu.core_type = #tpu.core_type<tc>, window_params = [{transform_indices = @transform_0, window_bounds = array<i64: 128, 32>}, {pipeline_mode = #tpu.pipeline_mode<synchronous>, transform_indices = @transform_1, window_bounds = array<i64: 32, 512>}, {pipeline_mode = #tpu.pipeline_mode<synchronous>, transform_indices = @transform_2, window_bounds = array<i64: 1, 512>}, {pipeline_mode = #tpu.pipeline_mode<synchronous>, transform_indices = @transform_3, window_bounds = array<i64: 512, 256>}, {pipeline_mode = #tpu.pipeline_mode<synchronous>, transform_indices = @transform_4, window_bounds = array<i64: 1, 256>}, {pipeline_mode = #tpu.pipeline_mode<synchronous>, transform_indices = @transform_5, window_bounds = array<i64: 256, 128>}, {pipeline_mode = #tpu.pipeline_mode<synchronous>, transform_indices = @transform_6, window_bounds = array<i64: 1, 128>}, {pipeline_mode = #tpu.pipeline_mode<synchronous>, transform_indices = @transform_7, window_bounds = array<i64: 128, 64>}, {pipeline_mode = #tpu.pipeline_mode<synchronous>, transform_indices = @transform_8, window_bounds = array<i64: 1, 64>}, {pipeline_mode = #tpu.pipeline_mode<synchronous>, transform_indices = @transform_9, window_bounds = array<i64: 64, 32>}, {pipeline_mode = #tpu.pipeline_mode<synchronous>, transform_indices = @transform_10, window_bounds = array<i64: 1, 32>}, {pipeline_mode = #tpu.pipeline_mode<synchronous>, transform_indices = @transform_11, window_bounds = array<i64: 1, 32>}, {pipeline_mode = #tpu.pipeline_mode<synchronous>, transform_indices = @transform_12, window_bounds = array<i64: 1, 1>}, {transform_indices = @transform_13, window_bounds = array<i64: 128, 1>}]} {
    %c0 = arith.constant 0 : index
    %c0_0 = arith.constant 0 : index
    %0 = vector.load %arg1[%c0, %c0_0] : memref<128x32xbf16, #tpu.memory_space<vmem>>, vector<128x32xbf16>
    %c0_1 = arith.constant 0 : index
    %c0_2 = arith.constant 0 : index
    %1 = vector.load %arg2[%c0_1, %c0_2] : memref<32x512xbf16, #tpu.memory_space<vmem>>, vector<32x512xbf16>
    %cst = arith.constant dense<0.000000e+00> : vector<128x512xf32>
    %2 = tpu.matmul %0, %1, %cst {dimension_numbers = #tpu.dot_dimension_numbers<[1], [0], [0], [1], [0, 0, 1, 1], [], []>} : vector<128x32xbf16>, vector<32x512xbf16>, vector<128x512xf32> -> vector<128x512xf32>
    %c0_3 = arith.constant 0 : index
    %c0_4 = arith.constant 0 : index
    %3 = vector.load %arg3[%c0_3, %c0_4] : memref<1x512xf32, #tpu.memory_space<vmem>>, vector<1x512xf32>
    %4 = vector.broadcast %3 : vector<1x512xf32> to vector<128x512xf32>
    %5 = arith.addf %2, %4 : vector<128x512xf32>
    %cst_5 = arith.constant 0.000000e+00 : f32
    %6 = vector.broadcast %cst_5 : f32 to vector<128x512xf32>
    %7 = arith.maximumf %5, %6 : vector<128x512xf32>
    %8 = arith.truncf %7 : vector<128x512xf32> to vector<128x512xbf16>
    %c0_6 = arith.constant 0 : index
    %c0_7 = arith.constant 0 : index
    %9 = vector.load %arg4[%c0_6, %c0_7] : memref<512x256xbf16, #tpu.memory_space<vmem>>, vector<512x256xbf16>
    %cst_8 = arith.constant dense<0.000000e+00> : vector<128x256xf32>
    %10 = tpu.matmul %8, %9, %cst_8 {dimension_numbers = #tpu.dot_dimension_numbers<[1], [0], [0], [1], [0, 0, 1, 1], [], []>} : vector<128x512xbf16>, vector<512x256xbf16>, vector<128x256xf32> -> vector<128x256xf32>
    %c0_9 = arith.constant 0 : index
    %c0_10 = arith.constant 0 : index
    %11 = vector.load %arg5[%c0_9, %c0_10] : memref<1x256xf32, #tpu.memory_space<vmem>>, vector<1x256xf32>
    %12 = vector.broadcast %11 : vector<1x256xf32> to vector<128x256xf32>
    %13 = arith.addf %10, %12 : vector<128x256xf32>
    %cst_11 = arith.constant 0.000000e+00 : f32
    %14 = vector.broadcast %cst_11 : f32 to vector<128x256xf32>
    %15 = arith.maximumf %13, %14 : vector<128x256xf32>
    %16 = arith.truncf %15 : vector<128x256xf32> to vector<128x256xbf16>
    %c0_12 = arith.constant 0 : index
    %c0_13 = arith.constant 0 : index
    %17 = vector.load %arg6[%c0_12, %c0_13] : memref<256x128xbf16, #tpu.memory_space<vmem>>, vector<256x128xbf16>
    %cst_14 = arith.constant dense<0.000000e+00> : vector<128x128xf32>
    %18 = tpu.matmul %16, %17, %cst_14 {dimension_numbers = #tpu.dot_dimension_numbers<[1], [0], [0], [1], [0, 0, 1, 1], [], []>} : vector<128x256xbf16>, vector<256x128xbf16>, vector<128x128xf32> -> vector<128x128xf32>
    %c0_15 = arith.constant 0 : index
    %c0_16 = arith.constant 0 : index
    %19 = vector.load %arg7[%c0_15, %c0_16] : memref<1x128xf32, #tpu.memory_space<vmem>>, vector<1x128xf32>
    %20 = vector.broadcast %19 : vector<1x128xf32> to vector<128x128xf32>
    %21 = arith.addf %18, %20 : vector<128x128xf32>
    %cst_17 = arith.constant 0.000000e+00 : f32
    %22 = vector.broadcast %cst_17 : f32 to vector<128x128xf32>
    %23 = arith.maximumf %21, %22 : vector<128x128xf32>
    %24 = arith.truncf %23 : vector<128x128xf32> to vector<128x128xbf16>
    %c0_18 = arith.constant 0 : index
    %c0_19 = arith.constant 0 : index
    %25 = vector.load %arg8[%c0_18, %c0_19] : memref<128x64xbf16, #tpu.memory_space<vmem>>, vector<128x64xbf16>
    %cst_20 = arith.constant dense<0.000000e+00> : vector<128x64xf32>
    %26 = tpu.matmul %24, %25, %cst_20 {dimension_numbers = #tpu.dot_dimension_numbers<[1], [0], [0], [1], [0, 0, 1, 1], [], []>} : vector<128x128xbf16>, vector<128x64xbf16>, vector<128x64xf32> -> vector<128x64xf32>
    %c0_21 = arith.constant 0 : index
    %c0_22 = arith.constant 0 : index
    %27 = vector.load %arg9[%c0_21, %c0_22] : memref<1x64xf32, #tpu.memory_space<vmem>>, vector<1x64xf32>
    %28 = vector.broadcast %27 : vector<1x64xf32> to vector<128x64xf32>
    %29 = arith.addf %26, %28 : vector<128x64xf32>
    %cst_23 = arith.constant 0.000000e+00 : f32
    %30 = vector.broadcast %cst_23 : f32 to vector<128x64xf32>
    %31 = arith.maximumf %29, %30 : vector<128x64xf32>
    %32 = arith.truncf %31 : vector<128x64xf32> to vector<128x64xbf16>
    %c0_24 = arith.constant 0 : index
    %c0_25 = arith.constant 0 : index
    %33 = vector.load %arg10[%c0_24, %c0_25] : memref<64x32xbf16, #tpu.memory_space<vmem>>, vector<64x32xbf16>
    %cst_26 = arith.constant dense<0.000000e+00> : vector<128x32xf32>
    %34 = tpu.matmul %32, %33, %cst_26 {dimension_numbers = #tpu.dot_dimension_numbers<[1], [0], [0], [1], [0, 0, 1, 1], [], []>} : vector<128x64xbf16>, vector<64x32xbf16>, vector<128x32xf32> -> vector<128x32xf32>
    %c0_27 = arith.constant 0 : index
    %c0_28 = arith.constant 0 : index
    %35 = vector.load %arg11[%c0_27, %c0_28] : memref<1x32xf32, #tpu.memory_space<vmem>>, vector<1x32xf32>
    %36 = vector.broadcast %35 : vector<1x32xf32> to vector<128x32xf32>
    %37 = arith.addf %34, %36 : vector<128x32xf32>
    %cst_29 = arith.constant 0.000000e+00 : f32
    %38 = vector.broadcast %cst_29 : f32 to vector<128x32xf32>
    %39 = arith.maximumf %37, %38 : vector<128x32xf32>
    %c0_30 = arith.constant 0 : index
    %c0_31 = arith.constant 0 : index
    %40 = vector.load %arg12[%c0_30, %c0_31] : memref<1x32xbf16, #tpu.memory_space<vmem>>, vector<1x32xbf16>
    %41 = arith.extf %40 : vector<1x32xbf16> to vector<1x32xf32>
    %42 = vector.broadcast %41 : vector<1x32xf32> to vector<128x32xf32>
    %43 = arith.mulf %39, %42 : vector<128x32xf32>
    %cst_32 = arith.constant dense<0.000000e+00> : vector<128xf32>
    %44 = vector.multi_reduction <add>, %43, %cst_32 [1] : vector<128x32xf32> to vector<128xf32>
    %45 = vector.shape_cast %44 : vector<128xf32> to vector<128x1xf32>
    %c0_33 = arith.constant 0 : index
    %c0_34 = arith.constant 0 : index
    %46 = vector.load %arg13[%c0_33, %c0_34] : memref<1x1xf32, #tpu.memory_space<vmem>>, vector<1x1xf32>
    %47 = vector.broadcast %46 : vector<1x1xf32> to vector<128x1xf32>
    %48 = arith.addf %45, %47 : vector<128x1xf32>
    %c0_35 = arith.constant 0 : index
    %c0_36 = arith.constant 0 : index
    %49 = vector.load %arg14[%c0_35, %c0_36] : memref<128x1xf32, #tpu.memory_space<vmem>>, vector<128x1xf32>
    tpu.vector_store %arg14[%c0_35, %c0_36], %48 {strides = array<i32>} : memref<128x1xf32, #tpu.memory_space<vmem>>, vector<128x1xf32>,
    return
  }
  func.func @transform_0(%arg0: i32) -> (i32, i32) {
    %c0_i32 = arith.constant 0 : i32
    %c0_i32_0 = arith.constant 0 : i32
    return %arg0, %c0_i32 : i32, i32
  }
  func.func @transform_1(%arg0: i32) -> (i32, i32) {
    %c0_i32 = arith.constant 0 : i32
    %c0_i32_0 = arith.constant 0 : i32
    %c0_i32_1 = arith.constant 0 : i32
    return %c0_i32, %c0_i32_0 : i32, i32
  }
  func.func @transform_2(%arg0: i32) -> (i32, i32) {
    %c0_i32 = arith.constant 0 : i32
    %c0_i32_0 = arith.constant 0 : i32
    %c0_i32_1 = arith.constant 0 : i32
    return %c0_i32, %c0_i32_0 : i32, i32
  }
  func.func @transform_3(%arg0: i32) -> (i32, i32) {
    %c0_i32 = arith.constant 0 : i32
    %c0_i32_0 = arith.constant 0 : i32
    %c0_i32_1 = arith.constant 0 : i32
    return %c0_i32, %c0_i32_0 : i32, i32
  }
  func.func @transform_4(%arg0: i32) -> (i32, i32) {
    %c0_i32 = arith.constant 0 : i32
    %c0_i32_0 = arith.constant 0 : i32
    %c0_i32_1 = arith.constant 0 : i32
    return %c0_i32, %c0_i32_0 : i32, i32
  }
  func.func @transform_5(%arg0: i32) -> (i32, i32) {
    %c0_i32 = arith.constant 0 : i32
    %c0_i32_0 = arith.constant 0 : i32
    %c0_i32_1 = arith.constant 0 : i32
    return %c0_i32, %c0_i32_0 : i32, i32
  }
  func.func @transform_6(%arg0: i32) -> (i32, i32) {
    %c0_i32 = arith.constant 0 : i32
    %c0_i32_0 = arith.constant 0 : i32
    %c0_i32_1 = arith.constant 0 : i32
    return %c0_i32, %c0_i32_0 : i32, i32
  }
  func.func @transform_7(%arg0: i32) -> (i32, i32) {
    %c0_i32 = arith.constant 0 : i32
    %c0_i32_0 = arith.constant 0 : i32
    %c0_i32_1 = arith.constant 0 : i32
    return %c0_i32, %c0_i32_0 : i32, i32
  }
  func.func @transform_8(%arg0: i32) -> (i32, i32) {
    %c0_i32 = arith.constant 0 : i32
    %c0_i32_0 = arith.constant 0 : i32
    %c0_i32_1 = arith.constant 0 : i32
    return %c0_i32, %c0_i32_0 : i32, i32
  }
  func.func @transform_9(%arg0: i32) -> (i32, i32) {
    %c0_i32 = arith.constant 0 : i32
    %c0_i32_0 = arith.constant 0 : i32
    %c0_i32_1 = arith.constant 0 : i32
    return %c0_i32, %c0_i32_0 : i32, i32
  }
  func.func @transform_10(%arg0: i32) -> (i32, i32) {
    %c0_i32 = arith.constant 0 : i32
    %c0_i32_0 = arith.constant 0 : i32
    %c0_i32_1 = arith.constant 0 : i32
    return %c0_i32, %c0_i32_0 : i32, i32
  }
  func.func @transform_11(%arg0: i32) -> (i32, i32) {
    %c0_i32 = arith.constant 0 : i32
    %c0_i32_0 = arith.constant 0 : i32
    %c0_i32_1 = arith.constant 0 : i32
    return %c0_i32, %c0_i32_0 : i32, i32
  }
  func.func @transform_12(%arg0: i32) -> (i32, i32) {
    %c0_i32 = arith.constant 0 : i32
    %c0_i32_0 = arith.constant 0 : i32
    %c0_i32_1 = arith.constant 0 : i32
    return %c0_i32, %c0_i32_0 : i32, i32
  }
  func.func @transform_13(%arg0: i32) -> (i32, i32) {
    %c0_i32 = arith.constant 0 : i32
    %c0_i32_0 = arith.constant 0 : i32
    return %arg0, %c0_i32 : i32, i32
  }
}

</mosaic_0001>

<llo_original>
// kernel: tpu_custom_call.1
$region0: #{tpu_custom_call.1}
  #allocation0 [shape = 'u32[]', space=smem, size = 0x4, offset = 0x4, fixed_abs, tag = 'smem constant byte address 0x4 - core index']
  #allocation1 [shape = 'u32[72,128]{1,0:T(1,128)}', space=vmem, size = 0x9000, scoped, tag = 'internal scratch']
  #allocation2 [shape = 'f32[1,1]{1,0:T(1,128)S(1)}', space=vmem, size = 0x200, scoped, tag = 'scoped memory for tpu_custom_call.1']
  %s0 = inlined_call_operand.vmem [shape: bf16[256,32], index: 0, kind: input, shape index: {}]
  %s1 = inlined_call_operand.vmem [shape: bf16[32,512], index: 1, kind: input, shape index: {}]
  %s2 = inlined_call_operand.vmem [shape: f32[1,512], index: 2, kind: input, shape index: {}]
  %s3 = inlined_call_operand.hbm [shape: bf16[512,256], index: 3, kind: input, shape index: {}]
  %s4 = inlined_call_operand.vmem [shape: f32[1,256], index: 4, kind: input, shape index: {}]
  %s5 = inlined_call_operand.vmem [shape: bf16[256,128], index: 5, kind: input, shape index: {}]
  %s6 = inlined_call_operand.vmem [shape: f32[1,128], index: 6, kind: input, shape index: {}]
  %s7 = inlined_call_operand.vmem [shape: bf16[128,64], index: 7, kind: input, shape index: {}]
  %s8 = inlined_call_operand.vmem [shape: f32[1,64], index: 8, kind: input, shape index: {}]
  %s9 = inlined_call_operand.vmem [shape: bf16[64,32], index: 9, kind: input, shape index: {}]
  %s10 = inlined_call_operand.vmem [shape: f32[1,32], index: 10, kind: input, shape index: {}]
  %s11 = inlined_call_operand.vmem [shape: bf16[1,32], index: 11, kind: input, shape index: {}]
  %s12 = inlined_call_operand.<no memory space> [shape: f32[1,1], index: 12, kind: input, shape index: {}]
  %s13 = inlined_call_operand.vmem [shape: f32[256,1], index: 13, kind: output, shape index: {}]
  %s14 = sld [smem:[#allocation0]]
  $region89: #{tpu_custom_call.1} parent=0
    _
  %s16 = ssub.s32 1, %s14
  %s17 = scalar_select 0, %s16, %s14
  %v18 = vstv %s12
  %19 = vst [vmem:[#allocation2] sm:$0x1] %v18
  $region1: #{tpu_custom_call.1} parent=0
    #allocation3 [shape = 'u8[262144]{0}', space=vmem, size = 0x40000, scoped, tag = 'input window, operand 3, single buffered']
    #allocation4 [shape = 's32[2]{0}', space=sflag, size = 0x8, scoped, tag = 'scoped memory for tpu_custom_call.1']
    %20 = vsyncpa [#allocation4], 0
    loop: start=0, step=1, limit=4
    $region2: #{tpu_custom_call.1} parent=1 // loop_pre_header
      _
    $region3: #{tpu_custom_call.1} parent=1 // loop_header
      %s22 = sphi 0, %s26
      %p23 = scmp.ge.s32.totalorder %s22, 4
      %s32 = sphi 0, %s34
      %s35 = sphi 0, %s32
      %s36 = sphi 0, %s35
      %s52 = sphi 0, %s36
      %s56 = sphi 0, %s56
      %s58 = sphi 0, %s56
      %s59 = sphi 0, %s58
      %s73 = sphi 0, %s59
      %s77 = sphi 0, %s77
      %s79 = sphi 0, %s77
      %s80 = sphi 0, %s79
      %s94 = sphi 0, %s80
      %s98 = sphi 0, %s98
      %s100 = sphi 0, %s98
      %s101 = sphi 0, %s100
      %s115 = sphi 0, %s101
      %s119 = sphi 0, %s119
      %s121 = sphi 0, %s119
      %s122 = sphi 0, %s121
      %s136 = sphi 0, %s122
      %s140 = sphi 0, %s140
      %s142 = sphi 0, %s140
      %s143 = sphi 0, %s142
      %s157 = sphi 0, %s143
      %s161 = sphi 0, %s161
      %s163 = sphi 0, %s161
      %s164 = sphi 0, %s163
      %s178 = sphi 0, %s164
      %s182 = sphi 0, %s182
      %s184 = sphi 0, %s182
      %s185 = sphi 0, %s184
      %s199 = sphi 0, %s185
      %s203 = sphi 0, %s203
      %s205 = sphi 0, %s203
      %s206 = sphi 0, %s205
      %s220 = sphi 0, %s206
      %s224 = sphi 0, %s224
      %s226 = sphi 0, %s224
      %s227 = sphi 0, %s226
      %s241 = sphi 0, %s227
      %s245 = sphi 0, %s245
      %s247 = sphi 0, %s245
      %s248 = sphi 0, %s247
      %s262 = sphi 0, %s248
      %s266 = sphi 0, %s266
      %s268 = sphi 0, %s266
      %s269 = sphi 0, %s268
      %s283 = sphi 0, %s269
      %s287 = sphi 0, %s287
      %s289 = sphi 0, %s287
      %s290 = sphi 0, %s289
      %s304 = sphi 0, %s290
      %s310 = sphi 0, %s312
      %s313 = sphi 0, %s310
      %s314 = sphi 0, %s313
      %s330 = sphi 0, %s314
    $region4: #{tpu_custom_call.1} parent=1 // loop_header_branch
      %25 = sbr.rel (%p23) target = $region8
    $region5: #{tpu_custom_call.1} parent=1 // loop_body
      %s27 = ssub.s32 %s22, 1
      %s28 = ssub.s32 %s22, 2
      %s29 = sadd.s32 %s22, 1
      %s30 = ssub.s32 %s22, %s29
      %p31 = scmp.eq.s32.totalorder %s30, 0
      %s33 = sadd.s32 %s32, 1
      %s34 = scalar_select %p31, %s32, %s33
      %p37 = pneg %p31
      %p38 = scmp.eq.s32.totalorder %s22, 1
      %p39 = por %p37, %p38
      %p40 = scmp.ne.s32.totalorder %s32, %s35
      %p41 = scmp.eq.s32.totalorder %s22, 0
      %p42 = por %p40, %p41
      %p43 = scmp.ne.s32.totalorder %s32, %s35
      %p44 = scmp.eq.s32.totalorder %s27, 1
      %p45 = por %p43, %p44
      %p46 = scmp.ne.s32.totalorder %s35, %s36
      %p47 = scmp.eq.s32.totalorder %s27, 0
      %p48 = por %p46, %p47
      %p49 = scmp.ne.s32.totalorder %s35, %s36
      %p50 = scmp.eq.s32.totalorder %s28, 1
      %p51 = por %p49, %p50
      %p53 = scmp.ne.s32.totalorder %s36, %s52
      %p54 = scmp.eq.s32.totalorder %s28, 0
      %p55 = por %p53, %p54
      %s57 = sadd.s32 %s56, 1
      %p60 = scmp.eq.s32.totalorder %s22, 1
      %p61 = scmp.ne.s32.totalorder %s56, %s58
      %p62 = scmp.eq.s32.totalorder %s22, 0
      %p63 = por %p61, %p62
      %p64 = scmp.ne.s32.totalorder %s56, %s58
      %p65 = scmp.eq.s32.totalorder %s27, 1
      %p66 = por %p64, %p65
      %p67 = scmp.ne.s32.totalorder %s58, %s59
      %p68 = scmp.eq.s32.totalorder %s27, 0
      %p69 = por %p67, %p68
      %p70 = scmp.ne.s32.totalorder %s58, %s59
      %p71 = scmp.eq.s32.totalorder %s28, 1
      %p72 = por %p70, %p71
      %p74 = scmp.ne.s32.totalorder %s59, %s73
      %p75 = scmp.eq.s32.totalorder %s28, 0
      %p76 = por %p74, %p75
      %s78 = sadd.s32 %s77, 1
      %p81 = scmp.eq.s32.totalorder %s22, 1
      %p82 = scmp.ne.s32.totalorder %s77, %s79
      %p83 = scmp.eq.s32.totalorder %s22, 0
      %p84 = por %p82, %p83
      %p85 = scmp.ne.s32.totalorder %s77, %s79
      %p86 = scmp.eq.s32.totalorder %s27, 1
      %p87 = por %p85, %p86
      %p88 = scmp.ne.s32.totalorder %s79, %s80
      %p89 = scmp.eq.s32.totalorder %s27, 0
      %p90 = por %p88, %p89
      %p91 = scmp.ne.s32.totalorder %s79, %s80
      %p92 = scmp.eq.s32.totalorder %s28, 1
      %p93 = por %p91, %p92
      %p95 = scmp.ne.s32.totalorder %s80, %s94
      %p96 = scmp.eq.s32.totalorder %s28, 0
      %p97 = por %p95, %p96
      %s99 = sadd.s32 %s98, 1
      %p102 = scmp.eq.s32.totalorder %s22, 1
      %p103 = scmp.ne.s32.totalorder %s98, %s100
      %p104 = scmp.eq.s32.totalorder %s22, 0
      %p105 = por %p103, %p104
      %p106 = scmp.ne.s32.totalorder %s98, %s100
      %p107 = scmp.eq.s32.totalorder %s27, 1
      %p108 = por %p106, %p107
      %p109 = scmp.ne.s32.totalorder %s100, %s101
      %p110 = scmp.eq.s32.totalorder %s27, 0
      %p111 = por %p109, %p110
      %p112 = scmp.ne.s32.totalorder %s100, %s101
      %p113 = scmp.eq.s32.totalorder %s28, 1
      %p114 = por %p112, %p113
      %p116 = scmp.ne.s32.totalorder %s101, %s115
      %p117 = scmp.eq.s32.totalorder %s28, 0
      %p118 = por %p116, %p117
      %s120 = sadd.s32 %s119, 1
      %p123 = scmp.eq.s32.totalorder %s22, 1
      %p124 = scmp.ne.s32.totalorder %s119, %s121
      %p125 = scmp.eq.s32.totalorder %s22, 0
      %p126 = por %p124, %p125
      %p127 = scmp.ne.s32.totalorder %s119, %s121
      %p128 = scmp.eq.s32.totalorder %s27, 1
      %p129 = por %p127, %p128
      %p130 = scmp.ne.s32.totalorder %s121, %s122
      %p131 = scmp.eq.s32.totalorder %s27, 0
      %p132 = por %p130, %p131
      %p133 = scmp.ne.s32.totalorder %s121, %s122
      %p134 = scmp.eq.s32.totalorder %s28, 1
      %p135 = por %p133, %p134
      %p137 = scmp.ne.s32.totalorder %s122, %s136
      %p138 = scmp.eq.s32.totalorder %s28, 0
      %p139 = por %p137, %p138
      %s141 = sadd.s32 %s140, 1
      %p144 = scmp.eq.s32.totalorder %s22, 1
      %p145 = scmp.ne.s32.totalorder %s140, %s142
      %p146 = scmp.eq.s32.totalorder %s22, 0
      %p147 = por %p145, %p146
      %p148 = scmp.ne.s32.totalorder %s140, %s142
      %p149 = scmp.eq.s32.totalorder %s27, 1
      %p150 = por %p148, %p149
      %p151 = scmp.ne.s32.totalorder %s142, %s143
      %p152 = scmp.eq.s32.totalorder %s27, 0
      %p153 = por %p151, %p152
      %p154 = scmp.ne.s32.totalorder %s142, %s143
      %p155 = scmp.eq.s32.totalorder %s28, 1
      %p156 = por %p154, %p155
      %p158 = scmp.ne.s32.totalorder %s143, %s157
      %p159 = scmp.eq.s32.totalorder %s28, 0
      %p160 = por %p158, %p159
      %s162 = sadd.s32 %s161, 1
      %p165 = scmp.eq.s32.totalorder %s22, 1
      %p166 = scmp.ne.s32.totalorder %s161, %s163
      %p167 = scmp.eq.s32.totalorder %s22, 0
      %p168 = por %p166, %p167
      %p169 = scmp.ne.s32.totalorder %s161, %s163
      %p170 = scmp.eq.s32.totalorder %s27, 1
      %p171 = por %p169, %p170
      %p172 = scmp.ne.s32.totalorder %s163, %s164
      %p173 = scmp.eq.s32.totalorder %s27, 0
      %p174 = por %p172, %p173
      %p175 = scmp.ne.s32.totalorder %s163, %s164
      %p176 = scmp.eq.s32.totalorder %s28, 1
      %p177 = por %p175, %p176
      %p179 = scmp.ne.s32.totalorder %s164, %s178
      %p180 = scmp.eq.s32.totalorder %s28, 0
      %p181 = por %p179, %p180
      %s183 = sadd.s32 %s182, 1
      %p186 = scmp.eq.s32.totalorder %s22, 1
      %p187 = scmp.ne.s32.totalorder %s182, %s184
      %p188 = scmp.eq.s32.totalorder %s22, 0
      %p189 = por %p187, %p188
      %p190 = scmp.ne.s32.totalorder %s182, %s184
      %p191 = scmp.eq.s32.totalorder %s27, 1
      %p192 = por %p190, %p191
      %p193 = scmp.ne.s32.totalorder %s184, %s185
      %p194 = scmp.eq.s32.totalorder %s27, 0
      %p195 = por %p193, %p194
      %p196 = scmp.ne.s32.totalorder %s184, %s185
      %p197 = scmp.eq.s32.totalorder %s28, 1
      %p198 = por %p196, %p197
      %p200 = scmp.ne.s32.totalorder %s185, %s199
      %p201 = scmp.eq.s32.totalorder %s28, 0
      %p202 = por %p200, %p201
      %s204 = sadd.s32 %s203, 1
      %p207 = scmp.eq.s32.totalorder %s22, 1
      %p208 = scmp.ne.s32.totalorder %s203, %s205
      %p209 = scmp.eq.s32.totalorder %s22, 0
      %p210 = por %p208, %p209
      %p211 = scmp.ne.s32.totalorder %s203, %s205
      %p212 = scmp.eq.s32.totalorder %s27, 1
      %p213 = por %p211, %p212
      %p214 = scmp.ne.s32.totalorder %s205, %s206
      %p215 = scmp.eq.s32.totalorder %s27, 0
      %p216 = por %p214, %p215
      %p217 = scmp.ne.s32.totalorder %s205, %s206
      %p218 = scmp.eq.s32.totalorder %s28, 1
      %p219 = por %p217, %p218
      %p221 = scmp.ne.s32.totalorder %s206, %s220
      %p222 = scmp.eq.s32.totalorder %s28, 0
      %p223 = por %p221, %p222
      %s225 = sadd.s32 %s224, 1
      %p228 = scmp.eq.s32.totalorder %s22, 1
      %p229 = scmp.ne.s32.totalorder %s224, %s226
      %p230 = scmp.eq.s32.totalorder %s22, 0
      %p231 = por %p229, %p230
      %p232 = scmp.ne.s32.totalorder %s224, %s226
      %p233 = scmp.eq.s32.totalorder %s27, 1
      %p234 = por %p232, %p233
      %p235 = scmp.ne.s32.totalorder %s226, %s227
      %p236 = scmp.eq.s32.totalorder %s27, 0
      %p237 = por %p235, %p236
      %p238 = scmp.ne.s32.totalorder %s226, %s227
      %p239 = scmp.eq.s32.totalorder %s28, 1
      %p240 = por %p238, %p239
      %p242 = scmp.ne.s32.totalorder %s227, %s241
      %p243 = scmp.eq.s32.totalorder %s28, 0
      %p244 = por %p242, %p243
      %s246 = sadd.s32 %s245, 1
      %p249 = scmp.eq.s32.totalorder %s22, 1
      %p250 = scmp.ne.s32.totalorder %s245, %s247
      %p251 = scmp.eq.s32.totalorder %s22, 0
      %p252 = por %p250, %p251
      %p253 = scmp.ne.s32.totalorder %s245, %s247
      %p254 = scmp.eq.s32.totalorder %s27, 1
      %p255 = por %p253, %p254
      %p256 = scmp.ne.s32.totalorder %s247, %s248
      %p257 = scmp.eq.s32.totalorder %s27, 0
      %p258 = por %p256, %p257
      %p259 = scmp.ne.s32.totalorder %s247, %s248
      %p260 = scmp.eq.s32.totalorder %s28, 1
      %p261 = por %p259, %p260
      %p263 = scmp.ne.s32.totalorder %s248, %s262
      %p264 = scmp.eq.s32.totalorder %s28, 0
      %p265 = por %p263, %p264
      %s267 = sadd.s32 %s266, 1
      %p270 = scmp.eq.s32.totalorder %s22, 1
      %p271 = scmp.ne.s32.totalorder %s266, %s268
      %p272 = scmp.eq.s32.totalorder %s22, 0
      %p273 = por %p271, %p272
      %p274 = scmp.ne.s32.totalorder %s266, %s268
      %p275 = scmp.eq.s32.totalorder %s27, 1
      %p276 = por %p274, %p275
      %p277 = scmp.ne.s32.totalorder %s268, %s269
      %p278 = scmp.eq.s32.totalorder %s27, 0
      %p279 = por %p277, %p278
      %p280 = scmp.ne.s32.totalorder %s268, %s269
      %p281 = scmp.eq.s32.totalorder %s28, 1
      %p282 = por %p280, %p281
      %p284 = scmp.ne.s32.totalorder %s269, %s283
      %p285 = scmp.eq.s32.totalorder %s28, 0
      %p286 = por %p284, %p285
      %s288 = sadd.s32 %s287, 1
      %p291 = scmp.eq.s32.totalorder %s22, 1
      %p292 = scmp.ne.s32.totalorder %s287, %s289
      %p293 = scmp.eq.s32.totalorder %s22, 0
      %p294 = por %p292, %p293
      %p295 = scmp.ne.s32.totalorder %s287, %s289
      %p296 = scmp.eq.s32.totalorder %s27, 1
      %p297 = por %p295, %p296
      %p298 = scmp.ne.s32.totalorder %s289, %s290
      %p299 = scmp.eq.s32.totalorder %s27, 0
      %p300 = por %p298, %p299
      %p301 = scmp.ne.s32.totalorder %s289, %s290
      %p302 = scmp.eq.s32.totalorder %s28, 1
      %p303 = por %p301, %p302
      %p305 = scmp.ne.s32.totalorder %s290, %s304
      %p306 = scmp.eq.s32.totalorder %s28, 0
      %p307 = por %p305, %p306
      %s308 = ssub.s32 %s22, %s29
      %p309 = scmp.eq.s32.totalorder %s308, 0
      %s311 = sadd.s32 %s310, 1
      %s312 = scalar_select %p309, %s310, %s311
      %p315 = pneg %p309
      %p316 = scmp.eq.s32.totalorder %s22, 1
      %p317 = por %p315, %p316
      %p318 = scmp.ne.s32.totalorder %s310, %s313
      %p319 = scmp.eq.s32.totalorder %s22, 0
      %p320 = por %p318, %p319
      %p321 = scmp.ne.s32.totalorder %s310, %s313
      %p322 = scmp.eq.s32.totalorder %s27, 1
      %p323 = por %p321, %p322
      %p324 = scmp.ne.s32.totalorder %s313, %s314
      %p325 = scmp.eq.s32.totalorder %s27, 0
      %p326 = por %p324, %p325
      %p327 = scmp.ne.s32.totalorder %s313, %s314
      %p328 = scmp.eq.s32.totalorder %s28, 1
      %p329 = por %p327, %p328
      %p331 = scmp.ne.s32.totalorder %s314, %s330
      %p332 = scmp.eq.s32.totalorder %s28, 0
      %p333 = por %p331, %p332
      %p334 = scmp.le.s32.totalorder 1, %s22
      %p335 = scmp.lt.s32.totalorder %s22, 3
      %p336 = pnand %p334, %p335
      %p337 = pneg %p336
      // Predicated region
      $region9: #{tpu_custom_call.1} parent=5 // pred_check
        _
      $region10: #{tpu_custom_call.1} parent=5 // pred_check_branch
        %339 = sbr.rel (%p336) target = $region12
      $region11: #{tpu_custom_call.1} parent=5 // pred_region
        %s340 = ssub.s32 %s22, 1
        // Predicated region
        $region13: #{tpu_custom_call.1} parent=11 // pred_check
          %p341 = pneg %p69
        $region14: #{tpu_custom_call.1} parent=11 // pred_check_branch
          %343 = sbr.rel (%p341) target = $region16
        $region15: #{tpu_custom_call.1} parent=11 // pred_region
          _
        $region16: #{tpu_custom_call.1} parent=11 // pred_fallthru
          _
        // Predicated region
        $region17: #{tpu_custom_call.1} parent=11 // pred_check
          %p344 = pneg %p90
        $region18: #{tpu_custom_call.1} parent=11 // pred_check_branch
          %346 = sbr.rel (%p344) target = $region20
        $region19: #{tpu_custom_call.1} parent=11 // pred_region
          _
        $region20: #{tpu_custom_call.1} parent=11 // pred_fallthru
          _
        // Predicated region
        $region21: #{tpu_custom_call.1} parent=11 // pred_check
          %p347 = pneg %p111
        $region22: #{tpu_custom_call.1} parent=11 // pred_check_branch
          %349 = sbr.rel (%p347) target = $region24
        $region23: #{tpu_custom_call.1} parent=11 // pred_region
          %351 = vsyncadd [#allocation4], 0
          %s352 = sshll.u32 %s3, 4
          %s353 = int_to_ptr.hbm [resolvable:$true] %s352
          %s354 = sshll.u32 [#allocation3], 4
          %s355 = int_to_ptr.vmem [resolvable:$true] %s354
          %360 = dma.hbm_to_vmem [thread:$0]  %s353, 8192, %s355, [#allocation4], 128, 128, 8
        $region24: #{tpu_custom_call.1} parent=11 // pred_fallthru
          _
        // Predicated region
        $region25: #{tpu_custom_call.1} parent=11 // pred_check
          %p361 = pneg %p132
        $region26: #{tpu_custom_call.1} parent=11 // pred_check_branch
          %363 = sbr.rel (%p361) target = $region28
        $region27: #{tpu_custom_call.1} parent=11 // pred_region
          _
        $region28: #{tpu_custom_call.1} parent=11 // pred_fallthru
          _
        // Predicated region
        $region29: #{tpu_custom_call.1} parent=11 // pred_check
          %p364 = pneg %p153
        $region30: #{tpu_custom_call.1} parent=11 // pred_check_branch
          %366 = sbr.rel (%p364) target = $region32
        $region31: #{tpu_custom_call.1} parent=11 // pred_region
          _
        $region32: #{tpu_custom_call.1} parent=11 // pred_fallthru
          _
        // Predicated region
        $region33: #{tpu_custom_call.1} parent=11 // pred_check
          %p367 = pneg %p174
        $region34: #{tpu_custom_call.1} parent=11 // pred_check_branch
          %369 = sbr.rel (%p367) target = $region36
        $region35: #{tpu_custom_call.1} parent=11 // pred_region
          _
        $region36: #{tpu_custom_call.1} parent=11 // pred_fallthru
          _
        // Predicated region
        $region37: #{tpu_custom_call.1} parent=11 // pred_check
          %p370 = pneg %p195
        $region38: #{tpu_custom_call.1} parent=11 // pred_check_branch
          %372 = sbr.rel (%p370) target = $region40
        $region39: #{tpu_custom_call.1} parent=11 // pred_region
          _
        $region40: #{tpu_custom_call.1} parent=11 // pred_fallthru
          _
        // Predicated region
        $region41: #{tpu_custom_call.1} parent=11 // pred_check
          %p373 = pneg %p216
        $region42: #{tpu_custom_call.1} parent=11 // pred_check_branch
          %375 = sbr.rel (%p373) target = $region44
        $region43: #{tpu_custom_call.1} parent=11 // pred_region
          _
        $region44: #{tpu_custom_call.1} parent=11 // pred_fallthru
          _
        // Predicated region
        $region45: #{tpu_custom_call.1} parent=11 // pred_check
          %p376 = pneg %p237
        $region46: #{tpu_custom_call.1} parent=11 // pred_check_branch
          %378 = sbr.rel (%p376) target = $region48
        $region47: #{tpu_custom_call.1} parent=11 // pred_region
          _
        $region48: #{tpu_custom_call.1} parent=11 // pred_fallthru
          _
        // Predicated region
        $region49: #{tpu_custom_call.1} parent=11 // pred_check
          %p379 = pneg %p258
        $region50: #{tpu_custom_call.1} parent=11 // pred_check_branch
          %381 = sbr.rel (%p379) target = $region52
        $region51: #{tpu_custom_call.1} parent=11 // pred_region
          _
        $region52: #{tpu_custom_call.1} parent=11 // pred_fallthru
          _
        // Predicated region
        $region53: #{tpu_custom_call.1} parent=11 // pred_check
          %p382 = pneg %p279
        $region54: #{tpu_custom_call.1} parent=11 // pred_check_branch
          %384 = sbr.rel (%p382) target = $region56
        $region55: #{tpu_custom_call.1} parent=11 // pred_region
          _
        $region56: #{tpu_custom_call.1} parent=11 // pred_fallthru
          _
        // Predicated region
        $region57: #{tpu_custom_call.1} parent=11 // pred_check
          %p385 = pneg %p300
        $region58: #{tpu_custom_call.1} parent=11 // pred_check_branch
          %387 = sbr.rel (%p385) target = $region60
        $region59: #{tpu_custom_call.1} parent=11 // pred_region
          _
        $region60: #{tpu_custom_call.1} parent=11 // pred_fallthru
          _
      $region12: #{tpu_custom_call.1} parent=5 // pred_fallthru
        _
      %p388 = scmp.lt.s32.totalorder %s22, 2
      // Predicated region
      $region61: #{tpu_custom_call.1} parent=5 // pred_check
        %p389 = pneg %p388
      $region62: #{tpu_custom_call.1} parent=5 // pred_check_branch
        %391 = sbr.rel (%p389) target = $region64
      $region63: #{tpu_custom_call.1} parent=5 // pred_region
        // Predicated region
        $region65: #{tpu_custom_call.1} parent=63 // pred_check
          %p392 = pneg %p42
        $region66: #{tpu_custom_call.1} parent=63 // pred_check_branch
          %394 = sbr.rel (%p392) target = $region68
        $region67: #{tpu_custom_call.1} parent=63 // pred_region
          %s395 = smul.u32 16, %s22
          %p396 = scmp.lt.s32.totalorder %s395, 31
          %s397 = scalar_select %p396, %s395, 31
          %s398 = smul.addr %s397, 4
          %s399 = scalar_lea.vmem %s0, %s398
          %s400 = smul.u32 16, %s22
        $region68: #{tpu_custom_call.1} parent=63 // pred_fallthru
          _
      $region64: #{tpu_custom_call.1} parent=5 // pred_fallthru
        _
      %p401 = scmp.le.s32.totalorder 1, %s22
      %p402 = scmp.lt.s32.totalorder %s22, 3
      %p403 = pnand %p401, %p402
      %p404 = pneg %p403
      // Predicated region
      $region69: #{tpu_custom_call.1} parent=5 // pred_check
        _
      $region70: #{tpu_custom_call.1} parent=5 // pred_check_branch
        %406 = sbr.rel (%p403) target = $region72
      $region71: #{tpu_custom_call.1} parent=5 // pred_region
        %s407 = ssub.s32 %s22, 1
        // Predicated region
        $region73: #{tpu_custom_call.1} parent=71 // pred_check
          %p408 = pneg %p111
        $region74: #{tpu_custom_call.1} parent=71 // pred_check_branch
          %410 = sbr.rel (%p408) target = $region76
        $region75: #{tpu_custom_call.1} parent=71 // pred_region
          %412 = dma.done [#allocation4], 8192
        $region76: #{tpu_custom_call.1} parent=71 // pred_fallthru
          _
        %s413 = smul.u32 16, %s27
        %p414 = scmp.lt.s32.totalorder %s413, 31
        %s415 = scalar_select %p414, %s413, 31
        %s416 = smul.addr %s415, 4
        %s417 = scalar_lea.vmem %s0, %s416
        %p418 = pneg %p48
        %p419 = pneg %p45
        %p420 = pneg %p69
        %p421 = pneg %p66
        %p422 = pneg %p90
        %p423 = pneg %p87
        %p424 = pneg %p111
        %p425 = pneg %p108
        %p426 = pneg %p132
        %p427 = pneg %p129
        %p428 = pneg %p153
        %p429 = pneg %p150
        %p430 = pneg %p174
        %p431 = pneg %p171
        %p432 = pneg %p195
        %p433 = pneg %p192
        %p434 = pneg %p216
        %p435 = pneg %p213
        %p436 = pneg %p237
        %p437 = pneg %p234
        %p438 = pneg %p258
        %p439 = pneg %p255
        %p440 = pneg %p279
        %p441 = pneg %p276
        %p442 = pneg %p300
        %p443 = pneg %p297
        %p444 = pneg %p326
        %p445 = pneg %p323
        %s446 = smul.u32 16, %s27
        %p447 = scmp.lt.s32.totalorder %s446, 31
        %s448 = scalar_select %p447, %s446, 31
        %s449 = smul.addr %s448, 8
        %s450 = scalar_lea.vmem %s13, %s449
        %s451 = smul.u32 16, %s27
        %p452 = scmp.lt.s32.totalorder %s451, 31
        %s453 = scalar_select %p452, %s451, 31
        %s454 = smul.addr %s453, 4
        %s455 = scalar_lea.vmem %s0, %s454
        %s456 = smul.u32 16, %s27
        %s457 = smul.u32 16, %s27
        %p458 = scmp.lt.s32.totalorder %s457, 31
        %s459 = scalar_select %p458, %s457, 31
        %s460 = smul.addr %s459, 8
        %s461 = scalar_lea.vmem %s13, %s460
        %s462 = smul.u32 16, %s27
        %v464 = vld [vmem:[%s455] sm:$0xf]
        %v465 = vld [vmem:[%s455 + $0x4] sm:$0xf]
        %v466 = vld [vmem:[%s455 + $0x8] sm:$0xf]
        %v467 = vld [vmem:[%s455 + $0xc] sm:$0xf]
        %v468 = vld [vmem:[%s455 + $0x10] sm:$0xf]
        %v469 = vld [vmem:[%s455 + $0x14] sm:$0xf]
        %v470 = vld [vmem:[%s455 + $0x18] sm:$0xf]
        %v471 = vld [vmem:[%s455 + $0x1c] sm:$0xf]
        %v472 = vld [vmem:[%s455 + $0x20] sm:$0xf]
        %v473 = vld [vmem:[%s455 + $0x24] sm:$0xf]
        %v474 = vld [vmem:[%s455 + $0x28] sm:$0xf]
        %v475 = vld [vmem:[%s455 + $0x2c] sm:$0xf]
        %v476 = vld [vmem:[%s455 + $0x30] sm:$0xf]
        %v477 = vld [vmem:[%s455 + $0x34] sm:$0xf]
        %v478 = vld [vmem:[%s455 + $0x38] sm:$0xf]
        %v479 = vld [vmem:[%s455 + $0x3c] sm:$0xf]
        %v480 = vld [vmem:[%s1] sm:$0xff]
        %v481 = vld [vmem:[%s1 + $0x8] sm:$0xff]
        %v482 = vld [vmem:[%s1 + $0x10] sm:$0xff]
        %v483 = vld [vmem:[%s1 + $0x18] sm:$0xff]
        %v484 = vld [vmem:[%s1 + $0x20] sm:$0xff]
        %v485 = vld [vmem:[%s1 + $0x28] sm:$0xff]
        %v486 = vld [vmem:[%s1 + $0x30] sm:$0xff]
        %v487 = vld [vmem:[%s1 + $0x38] sm:$0xff]
        %v488 = vld [vmem:[%s2] sm:$0xf]
        %v490 = vperm.slane %v488, 0
        %v491 = vperm.slane %v488, 1
        %v492 = vperm.slane %v488, 2
        %v493 = vperm.slane %v488, 3
        %v514 = vunpack.c.l.b16 %v464
        %v515 = vunpack.c.l.b16 %v465
        %v516 = vunpack.c.l.b16 %v466
        %v517 = vunpack.c.l.b16 %v467
        %v518 = vunpack.c.l.b16 %v468
        %v519 = vunpack.c.l.b16 %v469
        %v520 = vunpack.c.l.b16 %v470
        %v521 = vunpack.c.l.b16 %v471
        %v522 = vunpack.c.l.b16 %v472
        %v523 = vunpack.c.l.b16 %v473
        %v524 = vunpack.c.l.b16 %v474
        %v525 = vunpack.c.l.b16 %v475
        %v526 = vunpack.c.l.b16 %v476
        %v527 = vunpack.c.l.b16 %v477
        %v528 = vunpack.c.l.b16 %v478
        %v529 = vunpack.c.l.b16 %v479
        %v530 = vpack.c.b16 %v515, %v514
        %v531 = vpack.c.b16 %v517, %v516
        %v532 = vpack.c.b16 %v519, %v518
        %v533 = vpack.c.b16 %v521, %v520
        %v534 = vpack.c.b16 %v523, %v522
        %v535 = vpack.c.b16 %v525, %v524
        %v536 = vpack.c.b16 %v527, %v526
        %v537 = vpack.c.b16 %v529, %v528
        %v546 = vunpack.c.l.b16 %v480
        %v547 = vunpack.c.h.b16 %v480
        %v548 = vunpack.c.l.b16 %v481
        %v549 = vunpack.c.h.b16 %v481
        %v550 = vunpack.c.l.b16 %v482
        %v551 = vunpack.c.h.b16 %v482
        %v552 = vunpack.c.l.b16 %v483
        %v553 = vunpack.c.h.b16 %v483
        %v554 = vunpack.c.l.b16 %v484
        %v555 = vunpack.c.h.b16 %v484
        %v556 = vunpack.c.l.b16 %v485
        %v557 = vunpack.c.h.b16 %v485
        %v558 = vunpack.c.l.b16 %v486
        %v559 = vunpack.c.h.b16 %v486
        %v560 = vunpack.c.l.b16 %v487
        %v561 = vunpack.c.h.b16 %v487
        %v562 = vpack.c.b16 %v550, %v546
        %v563 = vpack.c.b16 %v551, %v547
        %v564 = vpack.c.b16 %v552, %v548
        %v565 = vpack.c.b16 %v553, %v549
        %v566 = vpack.c.b16 %v558, %v554
        %v567 = vpack.c.b16 %v559, %v555
        %v568 = vpack.c.b16 %v560, %v556
        %v569 = vpack.c.b16 %v561, %v557
        %vm578 = vcmask 261120
        %v580 = vsel %vm578, %v530, 0
        %v583 = vsel %vm578, %v531, 0
        %v586 = vsel %vm578, %v532, 0
        %v589 = vsel %vm578, %v533, 0
        %v592 = vsel %vm578, %v534, 0
        %v595 = vsel %vm578, %v535, 0
        %v598 = vsel %vm578, %v536, 0
        %v601 = vsel %vm578, %v537, 0
        %603 = vmatpush.bf16.msra.mxu0 0
        %604 = vmatpush.bf16.msra.mxu0 0
        %605 = vmatpush.bf16.msra.mxu0 0
        %606 = vmatpush.bf16.msra.mxu0 0
        %607 = vmatpush.bf16.msra.mxu0 0
        %608 = vmatpush.bf16.msra.mxu0 0
        %609 = vmatpush.bf16.msra.mxu0 %v566
        %610 = vmatpush.bf16.msra.mxu0 %v562
        %611 = vmatmul.bf16.gmra.mxu0 %v580
        %v612 = vpop.f32.mrf.mxu0
        %v613 = vadd.f32 %v490, %v612
        %v614 = vpop.f32.mrf.mxu0
        %v615 = vadd.f32 %v490, %v614
        %616 = vmatmul.bf16.gmra.mxu0 %v583
        %v617 = vpop.f32.mrf.mxu0
        %v618 = vadd.f32 %v490, %v617
        %v619 = vpop.f32.mrf.mxu0
        %v620 = vadd.f32 %v490, %v619
        %621 = vmatmul.bf16.gmra.mxu0 %v586
        %v622 = vpop.f32.mrf.mxu0
        %v623 = vadd.f32 %v490, %v622
        %v624 = vpop.f32.mrf.mxu0
        %v625 = vadd.f32 %v490, %v624
        %626 = vmatmul.bf16.gmra.mxu0 %v589
        %v627 = vpop.f32.mrf.mxu0
        %v628 = vadd.f32 %v490, %v627
        %v629 = vpop.f32.mrf.mxu0
        %v630 = vadd.f32 %v490, %v629
        %631 = vmatmul.bf16.gmra.mxu0 %v592
        %v632 = vpop.f32.mrf.mxu0
        %v633 = vadd.f32 %v490, %v632
        %v634 = vpop.f32.mrf.mxu0
        %v635 = vadd.f32 %v490, %v634
        %636 = vmatmul.bf16.gmra.mxu0 %v595
        %v637 = vpop.f32.mrf.mxu0
        %v638 = vadd.f32 %v490, %v637
        %v639 = vpop.f32.mrf.mxu0
        %v640 = vadd.f32 %v490, %v639
        %641 = vmatmul.bf16.gmra.mxu0 %v598
        %v642 = vpop.f32.mrf.mxu0
        %v643 = vadd.f32 %v490, %v642
        %v644 = vpop.f32.mrf.mxu0
        %v645 = vadd.f32 %v490, %v644
        %646 = vmatmul.bf16.gmra.mxu0 %v601
        %v647 = vpop.f32.mrf.mxu0
        %v648 = vadd.f32 %v490, %v647
        %v649 = vpop.f32.mrf.mxu0
        %v650 = vadd.f32 %v490, %v649
        %651 = vdwg.mxu0
        %652 = vmatpush.bf16.msra.mxu0 0
        %653 = vmatpush.bf16.msra.mxu0 0
        %654 = vmatpush.bf16.msra.mxu0 0
        %655 = vmatpush.bf16.msra.mxu0 0
        %656 = vmatpush.bf16.msra.mxu0 0
        %657 = vmatpush.bf16.msra.mxu0 0
        %658 = vmatpush.bf16.msra.mxu0 %v567
        %659 = vmatpush.bf16.msra.mxu0 %v563
        %660 = vmatmul.bf16.gmra.mxu0 %v580
        %v661 = vpop.f32.mrf.mxu0
        %v662 = vadd.f32 %v491, %v661
        %v663 = vpop.f32.mrf.mxu0
        %v664 = vadd.f32 %v491, %v663
        %665 = vmatmul.bf16.gmra.mxu0 %v583
        %v666 = vpop.f32.mrf.mxu0
        %v667 = vadd.f32 %v491, %v666
        %v668 = vpop.f32.mrf.mxu0
        %v669 = vadd.f32 %v491, %v668
        %670 = vmatmul.bf16.gmra.mxu0 %v586
        %v671 = vpop.f32.mrf.mxu0
        %v672 = vadd.f32 %v491, %v671
        %v673 = vpop.f32.mrf.mxu0
        %v674 = vadd.f32 %v491, %v673
        %675 = vmatmul.bf16.gmra.mxu0 %v589
        %v676 = vpop.f32.mrf.mxu0
        %v677 = vadd.f32 %v491, %v676
        %v678 = vpop.f32.mrf.mxu0
        %v679 = vadd.f32 %v491, %v678
        %680 = vmatmul.bf16.gmra.mxu0 %v592
        %v681 = vpop.f32.mrf.mxu0
        %v682 = vadd.f32 %v491, %v681
        %v683 = vpop.f32.mrf.mxu0
        %v684 = vadd.f32 %v491, %v683
        %685 = vmatmul.bf16.gmra.mxu0 %v595
        %v686 = vpop.f32.mrf.mxu0
        %v687 = vadd.f32 %v491, %v686
        %v688 = vpop.f32.mrf.mxu0
        %v689 = vadd.f32 %v491, %v688
        %690 = vmatmul.bf16.gmra.mxu0 %v598
        %v691 = vpop.f32.mrf.mxu0
        %v692 = vadd.f32 %v491, %v691
        %v693 = vpop.f32.mrf.mxu0
        %v694 = vadd.f32 %v491, %v693
        %695 = vmatmul.bf16.gmra.mxu0 %v601
        %v696 = vpop.f32.mrf.mxu0
        %v697 = vadd.f32 %v491, %v696
        %v698 = vpop.f32.mrf.mxu0
        %v699 = vadd.f32 %v491, %v698
        %700 = vdwg.mxu0
        %701 = vmatpush.bf16.msra.mxu0 0
        %702 = vmatpush.bf16.msra.mxu0 0
        %703 = vmatpush.bf16.msra.mxu0 0
        %704 = vmatpush.bf16.msra.mxu0 0
        %705 = vmatpush.bf16.msra.mxu0 0
        %706 = vmatpush.bf16.msra.mxu0 0
        %707 = vmatpush.bf16.msra.mxu0 %v568
        %708 = vmatpush.bf16.msra.mxu0 %v564
        %709 = vmatmul.bf16.gmra.mxu0 %v580
        %v710 = vpop.f32.mrf.mxu0
        %v711 = vadd.f32 %v492, %v710
        %v712 = vpop.f32.mrf.mxu0
        %v713 = vadd.f32 %v492, %v712
        %714 = vmatmul.bf16.gmra.mxu0 %v583
        %v715 = vpop.f32.mrf.mxu0
        %v716 = vadd.f32 %v492, %v715
        %v717 = vpop.f32.mrf.mxu0
        %v718 = vadd.f32 %v492, %v717
        %719 = vmatmul.bf16.gmra.mxu0 %v586
        %v720 = vpop.f32.mrf.mxu0
        %v721 = vadd.f32 %v492, %v720
        %v722 = vpop.f32.mrf.mxu0
        %v723 = vadd.f32 %v492, %v722
        %724 = vmatmul.bf16.gmra.mxu0 %v589
        %v725 = vpop.f32.mrf.mxu0
        %v726 = vadd.f32 %v492, %v725
        %v727 = vpop.f32.mrf.mxu0
        %v728 = vadd.f32 %v492, %v727
        %729 = vmatmul.bf16.gmra.mxu0 %v592
        %v730 = vpop.f32.mrf.mxu0
        %v731 = vadd.f32 %v492, %v730
        %v732 = vpop.f32.mrf.mxu0
        %v733 = vadd.f32 %v492, %v732
        %734 = vmatmul.bf16.gmra.mxu0 %v595
        %v735 = vpop.f32.mrf.mxu0
        %v736 = vadd.f32 %v492, %v735
        %v737 = vpop.f32.mrf.mxu0
        %v738 = vadd.f32 %v492, %v737
        %739 = vmatmul.bf16.gmra.mxu0 %v598
        %v740 = vpop.f32.mrf.mxu0
        %v741 = vadd.f32 %v492, %v740
        %v742 = vpop.f32.mrf.mxu0
        %v743 = vadd.f32 %v492, %v742
        %744 = vmatmul.bf16.gmra.mxu0 %v601
        %v745 = vpop.f32.mrf.mxu0
        %v746 = vadd.f32 %v492, %v745
        %v747 = vpop.f32.mrf.mxu0
        %v748 = vadd.f32 %v492, %v747
        %749 = vdwg.mxu0
        %750 = vmatpush.bf16.msra.mxu0 0
        %751 = vmatpush.bf16.msra.mxu0 0
        %752 = vmatpush.bf16.msra.mxu0 0
        %753 = vmatpush.bf16.msra.mxu0 0
        %754 = vmatpush.bf16.msra.mxu0 0
        %755 = vmatpush.bf16.msra.mxu0 0
        %756 = vmatpush.bf16.msra.mxu0 %v569
        %757 = vmatpush.bf16.msra.mxu0 %v565
        %758 = vmatmul.bf16.gmra.mxu0 %v580
        %v759 = vpop.f32.mrf.mxu0
        %v760 = vadd.f32 %v493, %v759
        %v761 = vpop.f32.mrf.mxu0
        %v762 = vadd.f32 %v493, %v761
        %763 = vmatmul.bf16.gmra.mxu0 %v583
        %v764 = vpop.f32.mrf.mxu0
        %v765 = vadd.f32 %v493, %v764
        %v766 = vpop.f32.mrf.mxu0
        %v767 = vadd.f32 %v493, %v766
        %768 = vmatmul.bf16.gmra.mxu0 %v586
        %v769 = vpop.f32.mrf.mxu0
        %v770 = vadd.f32 %v493, %v769
        %v771 = vpop.f32.mrf.mxu0
        %v772 = vadd.f32 %v493, %v771
        %773 = vmatmul.bf16.gmra.mxu0 %v589
        %v774 = vpop.f32.mrf.mxu0
        %v775 = vadd.f32 %v493, %v774
        %v776 = vpop.f32.mrf.mxu0
        %v777 = vadd.f32 %v493, %v776
        %778 = vmatmul.bf16.gmra.mxu0 %v592
        %v779 = vpop.f32.mrf.mxu0
        %v780 = vadd.f32 %v493, %v779
        %v781 = vpop.f32.mrf.mxu0
        %v782 = vadd.f32 %v493, %v781
        %783 = vmatmul.bf16.gmra.mxu0 %v595
        %v784 = vpop.f32.mrf.mxu0
        %v785 = vadd.f32 %v493, %v784
        %v786 = vpop.f32.mrf.mxu0
        %v787 = vadd.f32 %v493, %v786
        %788 = vmatmul.bf16.gmra.mxu0 %v598
        %v789 = vpop.f32.mrf.mxu0
        %v790 = vadd.f32 %v493, %v789
        %v791 = vpop.f32.mrf.mxu0
        %v792 = vadd.f32 %v493, %v791
        %793 = vmatmul.bf16.gmra.mxu0 %v601
        %v794 = vpop.f32.mrf.mxu0
        %v795 = vadd.f32 %v493, %v794
        %v796 = vpop.f32.mrf.mxu0
        %v797 = vadd.f32 %v493, %v796
        %798 = vdwg.mxu0
        %v799 = vmax.f32 %v613, 0.0
        %v800 = vmax.f32 %v662, 0.0
        %v801 = vmax.f32 %v711, 0.0
        %v802 = vmax.f32 %v760, 0.0
        %v803 = vmax.f32 %v615, 0.0
        %v804 = vmax.f32 %v664, 0.0
        %v805 = vmax.f32 %v713, 0.0
        %v806 = vmax.f32 %v762, 0.0
        %v807 = vmax.f32 %v618, 0.0
        %v808 = vmax.f32 %v667, 0.0
        %v809 = vmax.f32 %v716, 0.0
        %v810 = vmax.f32 %v765, 0.0
        %v811 = vmax.f32 %v620, 0.0
        %v812 = vmax.f32 %v669, 0.0
        %v813 = vmax.f32 %v718, 0.0
        %v814 = vmax.f32 %v767, 0.0
        %v815 = vmax.f32 %v623, 0.0
        %v816 = vmax.f32 %v672, 0.0
        %v817 = vmax.f32 %v721, 0.0
        %v818 = vmax.f32 %v770, 0.0
        %v819 = vmax.f32 %v625, 0.0
        %v820 = vmax.f32 %v674, 0.0
        %v821 = vmax.f32 %v723, 0.0
        %v822 = vmax.f32 %v772, 0.0
        %v823 = vmax.f32 %v628, 0.0
        %v824 = vmax.f32 %v677, 0.0
        %v825 = vmax.f32 %v726, 0.0
        %v826 = vmax.f32 %v775, 0.0
        %v827 = vmax.f32 %v630, 0.0
        %v828 = vmax.f32 %v679, 0.0
        %v829 = vmax.f32 %v728, 0.0
        %v830 = vmax.f32 %v777, 0.0
        %v831 = vmax.f32 %v633, 0.0
        %v832 = vmax.f32 %v682, 0.0
        %v833 = vmax.f32 %v731, 0.0
        %v834 = vmax.f32 %v780, 0.0
        %v835 = vmax.f32 %v635, 0.0
        %v836 = vmax.f32 %v684, 0.0
        %v837 = vmax.f32 %v733, 0.0
        %v838 = vmax.f32 %v782, 0.0
        %v839 = vmax.f32 %v638, 0.0
        %v840 = vmax.f32 %v687, 0.0
        %v841 = vmax.f32 %v736, 0.0
        %v842 = vmax.f32 %v785, 0.0
        %v843 = vmax.f32 %v640, 0.0
        %v844 = vmax.f32 %v689, 0.0
        %v845 = vmax.f32 %v738, 0.0
        %v846 = vmax.f32 %v787, 0.0
        %v847 = vmax.f32 %v643, 0.0
        %v848 = vmax.f32 %v692, 0.0
        %v849 = vmax.f32 %v741, 0.0
        %v850 = vmax.f32 %v790, 0.0
        %v851 = vmax.f32 %v645, 0.0
        %v852 = vmax.f32 %v694, 0.0
        %v853 = vmax.f32 %v743, 0.0
        %v854 = vmax.f32 %v792, 0.0
        %v855 = vmax.f32 %v648, 0.0
        %v856 = vmax.f32 %v697, 0.0
        %v857 = vmax.f32 %v746, 0.0
        %v858 = vmax.f32 %v795, 0.0
        %v859 = vmax.f32 %v650, 0.0
        %v860 = vmax.f32 %v699, 0.0
        %v861 = vmax.f32 %v748, 0.0
        %v862 = vmax.f32 %v797, 0.0
        %v863 = vpack.c.bf16 %v803, %v799
        %v864 = vpack.c.bf16 %v804, %v800
        %v865 = vpack.c.bf16 %v805, %v801
        %v866 = vpack.c.bf16 %v806, %v802
        %v867 = vpack.c.bf16 %v811, %v807
        %v868 = vpack.c.bf16 %v812, %v808
        %v869 = vpack.c.bf16 %v813, %v809
        %v870 = vpack.c.bf16 %v814, %v810
        %v871 = vpack.c.bf16 %v819, %v815
        %v872 = vpack.c.bf16 %v820, %v816
        %v873 = vpack.c.bf16 %v821, %v817
        %v874 = vpack.c.bf16 %v822, %v818
        %v875 = vpack.c.bf16 %v827, %v823
        %v876 = vpack.c.bf16 %v828, %v824
        %v877 = vpack.c.bf16 %v829, %v825
        %v878 = vpack.c.bf16 %v830, %v826
        %v879 = vpack.c.bf16 %v835, %v831
        %v880 = vpack.c.bf16 %v836, %v832
        %v881 = vpack.c.bf16 %v837, %v833
        %v882 = vpack.c.bf16 %v838, %v834
        %v883 = vpack.c.bf16 %v843, %v839
        %v884 = vpack.c.bf16 %v844, %v840
        %v885 = vpack.c.bf16 %v845, %v841
        %v886 = vpack.c.bf16 %v846, %v842
        %v887 = vpack.c.bf16 %v851, %v847
        %v888 = vpack.c.bf16 %v852, %v848
        %v889 = vpack.c.bf16 %v853, %v849
        %v890 = vpack.c.bf16 %v854, %v850
        %v891 = vpack.c.bf16 %v859, %v855
        %v892 = vpack.c.bf16 %v860, %v856
        %v893 = vpack.c.bf16 %v861, %v857
        %v894 = vpack.c.bf16 %v862, %v858
        %v895 = vld [vmem:[#allocation3] sm:$0xff]
        %v896 = vld [vmem:[#allocation3 + $0x8] sm:$0xff]
        %v897 = vld [vmem:[#allocation3 + $0x10] sm:$0xff]
        %v898 = vld [vmem:[#allocation3 + $0x18] sm:$0xff]
        %v899 = vld [vmem:[#allocation3 + $0x20] sm:$0xff]
        %v900 = vld [vmem:[#allocation3 + $0x28] sm:$0xff]
        %v901 = vld [vmem:[#allocation3 + $0x30] sm:$0xff]
        %v902 = vld [vmem:[#allocation3 + $0x38] sm:$0xff]
        %v903 = vld [vmem:[#allocation3 + $0x40] sm:$0xff]
        %v904 = vld [vmem:[#allocation3 + $0x48] sm:$0xff]
        %v905 = vld [vmem:[#allocation3 + $0x50] sm:$0xff]
        %v906 = vld [vmem:[#allocation3 + $0x58] sm:$0xff]
        %v907 = vld [vmem:[#allocation3 + $0x60] sm:$0xff]
        %v908 = vld [vmem:[#allocation3 + $0x68] sm:$0xff]
        %v909 = vld [vmem:[#allocation3 + $0x70] sm:$0xff]
        %v910 = vld [vmem:[#allocation3 + $0x78] sm:$0xff]
        %v911 = vld [vmem:[#allocation3 + $0x80] sm:$0xff]
        %v912 = vld [vmem:[#allocation3 + $0x88] sm:$0xff]
        %v913 = vld [vmem:[#allocation3 + $0x90] sm:$0xff]
        %v914 = vld [vmem:[#allocation3 + $0x98] sm:$0xff]
        %v915 = vld [vmem:[#allocation3 + $0xa0] sm:$0xff]
        %v916 = vld [vmem:[#allocation3 + $0xa8] sm:$0xff]
        %v917 = vld [vmem:[#allocation3 + $0xb0] sm:$0xff]
        %v918 = vld [vmem:[#allocation3 + $0xb8] sm:$0xff]
        %v919 = vld [vmem:[#allocation3 + $0xc0] sm:$0xff]
        %v920 = vld [vmem:[#allocation3 + $0xc8] sm:$0xff]
        %v921 = vld [vmem:[#allocation3 + $0xd0] sm:$0xff]
        %v922 = vld [vmem:[#allocation3 + $0xd8] sm:$0xff]
        %v923 = vld [vmem:[#allocation3 + $0xe0] sm:$0xff]
        %v924 = vld [vmem:[#allocation3 + $0xe8] sm:$0xff]
        %v925 = vld [vmem:[#allocation3 + $0xf0] sm:$0xff]
        %v926 = vld [vmem:[#allocation3 + $0xf8] sm:$0xff]
        %v927 = vld [vmem:[#allocation3 + $0x100] sm:$0xff]
        %v928 = vld [vmem:[#allocation3 + $0x108] sm:$0xff]
        %v929 = vld [vmem:[#allocation3 + $0x110] sm:$0xff]
        %v930 = vld [vmem:[#allocation3 + $0x118] sm:$0xff]
        %v931 = vld [vmem:[#allocation3 + $0x120] sm:$0xff]
        %v932 = vld [vmem:[#allocation3 + $0x128] sm:$0xff]
        %v933 = vld [vmem:[#allocation3 + $0x130] sm:$0xff]
        %v934 = vld [vmem:[#allocation3 + $0x138] sm:$0xff]
        %v935 = vld [vmem:[#allocation3 + $0x140] sm:$0xff]
        %v936 = vld [vmem:[#allocation3 + $0x148] sm:$0xff]
        %v937 = vld [vmem:[#allocation3 + $0x150] sm:$0xff]
        %v938 = vld [vmem:[#allocation3 + $0x158] sm:$0xff]
        %v939 = vld [vmem:[#allocation3 + $0x160] sm:$0xff]
        %v940 = vld [vmem:[#allocation3 + $0x168] sm:$0xff]
        %v941 = vld [vmem:[#allocation3 + $0x170] sm:$0xff]
        %v942 = vld [vmem:[#allocation3 + $0x178] sm:$0xff]
        %v943 = vld [vmem:[#allocation3 + $0x180] sm:$0xff]
        %v944 = vld [vmem:[#allocation3 + $0x188] sm:$0xff]
        %v945 = vld [vmem:[#allocation3 + $0x190] sm:$0xff]
        %v946 = vld [vmem:[#allocation3 + $0x198] sm:$0xff]
        %v947 = vld [vmem:[#allocation3 + $0x1a0] sm:$0xff]
        %v948 = vld [vmem:[#allocation3 + $0x1a8] sm:$0xff]
        %v949 = vld [vmem:[#allocation3 + $0x1b0] sm:$0xff]
        %v950 = vld [vmem:[#allocation3 + $0x1b8] sm:$0xff]
        %v951 = vld [vmem:[#allocation3 + $0x1c0] sm:$0xff]
        %v952 = vld [vmem:[#allocation3 + $0x1c8] sm:$0xff]
        %v953 = vld [vmem:[#allocation3 + $0x1d0] sm:$0xff]
        %v954 = vld [vmem:[#allocation3 + $0x1d8] sm:$0xff]
        %v955 = vld [vmem:[#allocation3 + $0x1e0] sm:$0xff]
        %v956 = vld [vmem:[#allocation3 + $0x1e8] sm:$0xff]
        %v957 = vld [vmem:[#allocation3 + $0x1f0] sm:$0xff]
        %v958 = vld [vmem:[#allocation3 + $0x1f8] sm:$0xff]
        %v959 = vld [vmem:[%s4] sm:$0x3]
        %v961 = vperm.slane %v959, 0
        %v962 = vperm.slane %v959, 1
        %v1029 = vunpack.c.l.b16 %v895
        %v1030 = vunpack.c.h.b16 %v895
        %v1031 = vunpack.c.l.b16 %v896
        %v1032 = vunpack.c.h.b16 %v896
        %v1033 = vunpack.c.l.b16 %v897
        %v1034 = vunpack.c.h.b16 %v897
        %v1035 = vunpack.c.l.b16 %v898
        %v1036 = vunpack.c.h.b16 %v898
        %v1037 = vunpack.c.l.b16 %v899
        %v1038 = vunpack.c.h.b16 %v899
        %v1039 = vunpack.c.l.b16 %v900
        %v1040 = vunpack.c.h.b16 %v900
        %v1041 = vunpack.c.l.b16 %v901
        %v1042 = vunpack.c.h.b16 %v901
        %v1043 = vunpack.c.l.b16 %v902
        %v1044 = vunpack.c.h.b16 %v902
        %v1045 = vunpack.c.l.b16 %v903
        %v1046 = vunpack.c.h.b16 %v903
        %v1047 = vunpack.c.l.b16 %v904
        %v1048 = vunpack.c.h.b16 %v904
        %v1049 = vunpack.c.l.b16 %v905
        %v1050 = vunpack.c.h.b16 %v905
        %v1051 = vunpack.c.l.b16 %v906
        %v1052 = vunpack.c.h.b16 %v906
        %v1053 = vunpack.c.l.b16 %v907
        %v1054 = vunpack.c.h.b16 %v907
        %v1055 = vunpack.c.l.b16 %v908
        %v1056 = vunpack.c.h.b16 %v908
        %v1057 = vunpack.c.l.b16 %v909
        %v1058 = vunpack.c.h.b16 %v909
        %v1059 = vunpack.c.l.b16 %v910
        %v1060 = vunpack.c.h.b16 %v910
        %v1061 = vunpack.c.l.b16 %v911
        %v1062 = vunpack.c.h.b16 %v911
        %v1063 = vunpack.c.l.b16 %v912
        %v1064 = vunpack.c.h.b16 %v912
        %v1065 = vunpack.c.l.b16 %v913
        %v1066 = vunpack.c.h.b16 %v913
        %v1067 = vunpack.c.l.b16 %v914
        %v1068 = vunpack.c.h.b16 %v914
        %v1069 = vunpack.c.l.b16 %v915
        %v1070 = vunpack.c.h.b16 %v915
        %v1071 = vunpack.c.l.b16 %v916
        %v1072 = vunpack.c.h.b16 %v916
        %v1073 = vunpack.c.l.b16 %v917
        %v1074 = vunpack.c.h.b16 %v917
        %v1075 = vunpack.c.l.b16 %v918
        %v1076 = vunpack.c.h.b16 %v918
        %v1077 = vunpack.c.l.b16 %v919
        %v1078 = vunpack.c.h.b16 %v919
        %v1079 = vunpack.c.l.b16 %v920
        %v1080 = vunpack.c.h.b16 %v920
        %v1081 = vunpack.c.l.b16 %v921
        %v1082 = vunpack.c.h.b16 %v921
        %v1083 = vunpack.c.l.b16 %v922
        %v1084 = vunpack.c.h.b16 %v922
        %v1085 = vunpack.c.l.b16 %v923
        %v1086 = vunpack.c.h.b16 %v923
        %v1087 = vunpack.c.l.b16 %v924
        %v1088 = vunpack.c.h.b16 %v924
        %v1089 = vunpack.c.l.b16 %v925
        %v1090 = vunpack.c.h.b16 %v925
        %v1091 = vunpack.c.l.b16 %v926
        %v1092 = vunpack.c.h.b16 %v926
        %v1093 = vunpack.c.l.b16 %v927
        %v1094 = vunpack.c.h.b16 %v927
        %v1095 = vunpack.c.l.b16 %v928
        %v1096 = vunpack.c.h.b16 %v928
        %v1097 = vunpack.c.l.b16 %v929
        %v1098 = vunpack.c.h.b16 %v929
        %v1099 = vunpack.c.l.b16 %v930
        %v1100 = vunpack.c.h.b16 %v930
        %v1101 = vunpack.c.l.b16 %v931
        %v1102 = vunpack.c.h.b16 %v931
        %v1103 = vunpack.c.l.b16 %v932
        %v1104 = vunpack.c.h.b16 %v932
        %v1105 = vunpack.c.l.b16 %v933
        %v1106 = vunpack.c.h.b16 %v933
        %v1107 = vunpack.c.l.b16 %v934
        %v1108 = vunpack.c.h.b16 %v934
        %v1109 = vunpack.c.l.b16 %v935
        %v1110 = vunpack.c.h.b16 %v935
        %v1111 = vunpack.c.l.b16 %v936
        %v1112 = vunpack.c.h.b16 %v936
        %v1113 = vunpack.c.l.b16 %v937
        %v1114 = vunpack.c.h.b16 %v937
        %v1115 = vunpack.c.l.b16 %v938
        %v1116 = vunpack.c.h.b16 %v938
        %v1117 = vunpack.c.l.b16 %v939
        %v1118 = vunpack.c.h.b16 %v939
        %v1119 = vunpack.c.l.b16 %v940
        %v1120 = vunpack.c.h.b16 %v940
        %v1121 = vunpack.c.l.b16 %v941
        %v1122 = vunpack.c.h.b16 %v941
        %v1123 = vunpack.c.l.b16 %v942
        %v1124 = vunpack.c.h.b16 %v942
        %v1125 = vunpack.c.l.b16 %v943
        %v1126 = vunpack.c.h.b16 %v943
        %v1127 = vunpack.c.l.b16 %v944
        %v1128 = vunpack.c.h.b16 %v944
        %v1129 = vunpack.c.l.b16 %v945
        %v1130 = vunpack.c.h.b16 %v945
        %v1131 = vunpack.c.l.b16 %v946
        %v1132 = vunpack.c.h.b16 %v946
        %v1133 = vunpack.c.l.b16 %v947
        %v1134 = vunpack.c.h.b16 %v947
        %v1135 = vunpack.c.l.b16 %v948
        %v1136 = vunpack.c.h.b16 %v948
        %v1137 = vunpack.c.l.b16 %v949
        %v1138 = vunpack.c.h.b16 %v949
        %v1139 = vunpack.c.l.b16 %v950
        %v1140 = vunpack.c.h.b16 %v950
        %v1141 = vunpack.c.l.b16 %v951
        %v1142 = vunpack.c.h.b16 %v951
        %v1143 = vunpack.c.l.b16 %v952
        %v1144 = vunpack.c.h.b16 %v952
        %v1145 = vunpack.c.l.b16 %v953
        %v1146 = vunpack.c.h.b16 %v953
        %v1147 = vunpack.c.l.b16 %v954
        %v1148 = vunpack.c.h.b16 %v954
        %v1149 = vunpack.c.l.b16 %v955
        %v1150 = vunpack.c.h.b16 %v955
        %v1151 = vunpack.c.l.b16 %v956
        %v1152 = vunpack.c.h.b16 %v956
        %v1153 = vunpack.c.l.b16 %v957
        %v1154 = vunpack.c.h.b16 %v957
        %v1155 = vunpack.c.l.b16 %v958
        %v1156 = vunpack.c.h.b16 %v958
        %v1157 = vpack.c.b16 %v1031, %v1029
        %v1158 = vpack.c.b16 %v1032, %v1030
        %v1159 = vpack.c.b16 %v1035, %v1033
        %v1160 = vpack.c.b16 %v1036, %v1034
        %v1161 = vpack.c.b16 %v1039, %v1037
        %v1162 = vpack.c.b16 %v1040, %v1038
        %v1163 = vpack.c.b16 %v1043, %v1041
        %v1164 = vpack.c.b16 %v1044, %v1042
        %v1165 = vpack.c.b16 %v1047, %v1045
        %v1166 = vpack.c.b16 %v1048, %v1046
        %v1167 = vpack.c.b16 %v1051, %v1049
        %v1168 = vpack.c.b16 %v1052, %v1050
        %v1169 = vpack.c.b16 %v1055, %v1053
        %v1170 = vpack.c.b16 %v1056, %v1054
        %v1171 = vpack.c.b16 %v1059, %v1057
        %v1172 = vpack.c.b16 %v1060, %v1058
        %v1173 = vpack.c.b16 %v1063, %v1061
        %v1174 = vpack.c.b16 %v1064, %v1062
        %v1175 = vpack.c.b16 %v1067, %v1065
        %v1176 = vpack.c.b16 %v1068, %v1066
        %v1177 = vpack.c.b16 %v1071, %v1069
        %v1178 = vpack.c.b16 %v1072, %v1070
        %v1179 = vpack.c.b16 %v1075, %v1073
        %v1180 = vpack.c.b16 %v1076, %v1074
        %v1181 = vpack.c.b16 %v1079, %v1077
        %v1182 = vpack.c.b16 %v1080, %v1078
        %v1183 = vpack.c.b16 %v1083, %v1081
        %v1184 = vpack.c.b16 %v1084, %v1082
        %v1185 = vpack.c.b16 %v1087, %v1085
        %v1186 = vpack.c.b16 %v1088, %v1086
        %v1187 = vpack.c.b16 %v1091, %v1089
        %v1188 = vpack.c.b16 %v1092, %v1090
        %v1189 = vpack.c.b16 %v1095, %v1093
        %v1190 = vpack.c.b16 %v1096, %v1094
        %v1191 = vpack.c.b16 %v1099, %v1097
        %v1192 = vpack.c.b16 %v1100, %v1098
        %v1193 = vpack.c.b16 %v1103, %v1101
        %v1194 = vpack.c.b16 %v1104, %v1102
        %v1195 = vpack.c.b16 %v1107, %v1105
        %v1196 = vpack.c.b16 %v1108, %v1106
        %v1197 = vpack.c.b16 %v1111, %v1109
        %v1198 = vpack.c.b16 %v1112, %v1110
        %v1199 = vpack.c.b16 %v1115, %v1113
        %v1200 = vpack.c.b16 %v1116, %v1114
        %v1201 = vpack.c.b16 %v1119, %v1117
        %v1202 = vpack.c.b16 %v1120, %v1118
        %v1203 = vpack.c.b16 %v1123, %v1121
        %v1204 = vpack.c.b16 %v1124, %v1122
        %v1205 = vpack.c.b16 %v1127, %v1125
        %v1206 = vpack.c.b16 %v1128, %v1126
        %v1207 = vpack.c.b16 %v1131, %v1129
        %v1208 = vpack.c.b16 %v1132, %v1130
        %v1209 = vpack.c.b16 %v1135, %v1133
        %v1210 = vpack.c.b16 %v1136, %v1134
        %v1211 = vpack.c.b16 %v1139, %v1137
        %v1212 = vpack.c.b16 %v1140, %v1138
        %v1213 = vpack.c.b16 %v1143, %v1141
        %v1214 = vpack.c.b16 %v1144, %v1142
        %v1215 = vpack.c.b16 %v1147, %v1145
        %v1216 = vpack.c.b16 %v1148, %v1146
        %v1217 = vpack.c.b16 %v1151, %v1149
        %v1218 = vpack.c.b16 %v1152, %v1150
        %v1219 = vpack.c.b16 %v1155, %v1153
        %v1220 = vpack.c.b16 %v1156, %v1154
        %1285 = vmatpush.bf16.msra.mxu0 %v1171
        %1286 = vmatpush.bf16.msra.mxu0 %v1169
        %1287 = vmatpush.bf16.msra.mxu0 %v1167
        %1288 = vmatpush.bf16.msra.mxu0 %v1165
        %1289 = vmatpush.bf16.msra.mxu0 %v1163
        %1290 = vmatpush.bf16.msra.mxu0 %v1161
        %1291 = vmatpush.bf16.msra.mxu0 %v1159
        %1292 = vmatpush.bf16.msra.mxu0 %v1157
        %1293 = vmatmul.bf16.gmra.mxu0 %v863
        %v1294 = vpop.f32.mrf.mxu0
        %v1295 = vadd.f32 %v961, %v1294
        %v1296 = vpop.f32.mrf.mxu0
        %v1297 = vadd.f32 %v961, %v1296
        %1298 = vmatmul.bf16.gmra.mxu0 %v867
        %v1299 = vpop.f32.mrf.mxu0
        %v1300 = vadd.f32 %v961, %v1299
        %v1301 = vpop.f32.mrf.mxu0
        %v1302 = vadd.f32 %v961, %v1301
        %1303 = vmatmul.bf16.gmra.mxu0 %v871
        %v1304 = vpop.f32.mrf.mxu0
        %v1305 = vadd.f32 %v961, %v1304
        %v1306 = vpop.f32.mrf.mxu0
        %v1307 = vadd.f32 %v961, %v1306
        %1308 = vmatmul.bf16.gmra.mxu0 %v875
        %v1309 = vpop.f32.mrf.mxu0
        %v1310 = vadd.f32 %v961, %v1309
        %v1311 = vpop.f32.mrf.mxu0
        %v1312 = vadd.f32 %v961, %v1311
        %1313 = vmatmul.bf16.gmra.mxu0 %v879
        %v1314 = vpop.f32.mrf.mxu0
        %v1315 = vadd.f32 %v961, %v1314
        %v1316 = vpop.f32.mrf.mxu0
        %v1317 = vadd.f32 %v961, %v1316
        %1318 = vmatmul.bf16.gmra.mxu0 %v883
        %v1319 = vpop.f32.mrf.mxu0
        %v1320 = vadd.f32 %v961, %v1319
        %v1321 = vpop.f32.mrf.mxu0
        %v1322 = vadd.f32 %v961, %v1321
        %1323 = vmatmul.bf16.gmra.mxu0 %v887
        %v1324 = vpop.f32.mrf.mxu0
        %v1325 = vadd.f32 %v961, %v1324
        %v1326 = vpop.f32.mrf.mxu0
        %v1327 = vadd.f32 %v961, %v1326
        %1328 = vmatmul.bf16.gmra.mxu0 %v891
        %v1329 = vpop.f32.mrf.mxu0
        %v1330 = vadd.f32 %v961, %v1329
        %v1331 = vpop.f32.mrf.mxu0
        %v1332 = vadd.f32 %v961, %v1331
        %1333 = vdwg.mxu0
        %1334 = vmatpush.bf16.msra.mxu0 %v1187
        %1335 = vmatpush.bf16.msra.mxu0 %v1185
        %1336 = vmatpush.bf16.msra.mxu0 %v1183
        %1337 = vmatpush.bf16.msra.mxu0 %v1181
        %1338 = vmatpush.bf16.msra.mxu0 %v1179
        %1339 = vmatpush.bf16.msra.mxu0 %v1177
        %1340 = vmatpush.bf16.msra.mxu0 %v1175
        %1341 = vmatpush.bf16.msra.mxu0 %v1173
        %1342 = vmatmul.bf16.gmra.mxu0 %v864
        %v1343 = vpop.f32.mrf.mxu0
        %v1344 = vadd.f32 %v1295, %v1343
        %v1345 = vpop.f32.mrf.mxu0
        %v1346 = vadd.f32 %v1297, %v1345
        %1347 = vmatmul.bf16.gmra.mxu0 %v868
        %v1348 = vpop.f32.mrf.mxu0
        %v1349 = vadd.f32 %v1300, %v1348
        %v1350 = vpop.f32.mrf.mxu0
        %v1351 = vadd.f32 %v1302, %v1350
        %1352 = vmatmul.bf16.gmra.mxu0 %v872
        %v1353 = vpop.f32.mrf.mxu0
        %v1354 = vadd.f32 %v1305, %v1353
        %v1355 = vpop.f32.mrf.mxu0
        %v1356 = vadd.f32 %v1307, %v1355
        %1357 = vmatmul.bf16.gmra.mxu0 %v876
        %v1358 = vpop.f32.mrf.mxu0
        %v1359 = vadd.f32 %v1310, %v1358
        %v1360 = vpop.f32.mrf.mxu0
        %v1361 = vadd.f32 %v1312, %v1360
        %1362 = vmatmul.bf16.gmra.mxu0 %v880
        %v1363 = vpop.f32.mrf.mxu0
        %v1364 = vadd.f32 %v1315, %v1363
        %v1365 = vpop.f32.mrf.mxu0
        %v1366 = vadd.f32 %v1317, %v1365
        %1367 = vmatmul.bf16.gmra.mxu0 %v884
        %v1368 = vpop.f32.mrf.mxu0
        %v1369 = vadd.f32 %v1320, %v1368
        %v1370 = vpop.f32.mrf.mxu0
        %v1371 = vadd.f32 %v1322, %v1370
        %1372 = vmatmul.bf16.gmra.mxu0 %v888
        %v1373 = vpop.f32.mrf.mxu0
        %v1374 = vadd.f32 %v1325, %v1373
        %v1375 = vpop.f32.mrf.mxu0
        %v1376 = vadd.f32 %v1327, %v1375
        %1377 = vmatmul.bf16.gmra.mxu0 %v892
        %v1378 = vpop.f32.mrf.mxu0
        %v1379 = vadd.f32 %v1330, %v1378
        %v1380 = vpop.f32.mrf.mxu0
        %v1381 = vadd.f32 %v1332, %v1380
        %1382 = vdwg.mxu0
        %1383 = vmatpush.bf16.msra.mxu0 %v1203
        %1384 = vmatpush.bf16.msra.mxu0 %v1201
        %1385 = vmatpush.bf16.msra.mxu0 %v1199
        %1386 = vmatpush.bf16.msra.mxu0 %v1197
        %1387 = vmatpush.bf16.msra.mxu0 %v1195
        %1388 = vmatpush.bf16.msra.mxu0 %v1193
        %1389 = vmatpush.bf16.msra.mxu0 %v1191
        %1390 = vmatpush.bf16.msra.mxu0 %v1189
        %1391 = vmatmul.bf16.gmra.mxu0 %v865
        %v1392 = vpop.f32.mrf.mxu0
        %v1393 = vadd.f32 %v1344, %v1392
        %v1394 = vpop.f32.mrf.mxu0
        %v1395 = vadd.f32 %v1346, %v1394
        %1396 = vmatmul.bf16.gmra.mxu0 %v869
        %v1397 = vpop.f32.mrf.mxu0
        %v1398 = vadd.f32 %v1349, %v1397
        %v1399 = vpop.f32.mrf.mxu0
        %v1400 = vadd.f32 %v1351, %v1399
        %1401 = vmatmul.bf16.gmra.mxu0 %v873
        %v1402 = vpop.f32.mrf.mxu0
        %v1403 = vadd.f32 %v1354, %v1402
        %v1404 = vpop.f32.mrf.mxu0
        %v1405 = vadd.f32 %v1356, %v1404
        %1406 = vmatmul.bf16.gmra.mxu0 %v877
        %v1407 = vpop.f32.mrf.mxu0
        %v1408 = vadd.f32 %v1359, %v1407
        %v1409 = vpop.f32.mrf.mxu0
        %v1410 = vadd.f32 %v1361, %v1409
        %1411 = vmatmul.bf16.gmra.mxu0 %v881
        %v1412 = vpop.f32.mrf.mxu0
        %v1413 = vadd.f32 %v1364, %v1412
        %v1414 = vpop.f32.mrf.mxu0
        %v1415 = vadd.f32 %v1366, %v1414
        %1416 = vmatmul.bf16.gmra.mxu0 %v885
        %v1417 = vpop.f32.mrf.mxu0
        %v1418 = vadd.f32 %v1369, %v1417
        %v1419 = vpop.f32.mrf.mxu0
        %v1420 = vadd.f32 %v1371, %v1419
        %1421 = vmatmul.bf16.gmra.mxu0 %v889
        %v1422 = vpop.f32.mrf.mxu0
        %v1423 = vadd.f32 %v1374, %v1422
        %v1424 = vpop.f32.mrf.mxu0
        %v1425 = vadd.f32 %v1376, %v1424
        %1426 = vmatmul.bf16.gmra.mxu0 %v893
        %v1427 = vpop.f32.mrf.mxu0
        %v1428 = vadd.f32 %v1379, %v1427
        %v1429 = vpop.f32.mrf.mxu0
        %v1430 = vadd.f32 %v1381, %v1429
        %1431 = vdwg.mxu0
        %1432 = vmatpush.bf16.msra.mxu0 %v1219
        %1433 = vmatpush.bf16.msra.mxu0 %v1217
        %1434 = vmatpush.bf16.msra.mxu0 %v1215
        %1435 = vmatpush.bf16.msra.mxu0 %v1213
        %1436 = vmatpush.bf16.msra.mxu0 %v1211
        %1437 = vmatpush.bf16.msra.mxu0 %v1209
        %1438 = vmatpush.bf16.msra.mxu0 %v1207
        %1439 = vmatpush.bf16.msra.mxu0 %v1205
        %1440 = vmatmul.bf16.gmra.mxu0 %v866
        %v1441 = vpop.f32.mrf.mxu0
        %v1442 = vadd.f32 %v1393, %v1441
        %v1443 = vpop.f32.mrf.mxu0
        %v1444 = vadd.f32 %v1395, %v1443
        %1445 = vmatmul.bf16.gmra.mxu0 %v870
        %v1446 = vpop.f32.mrf.mxu0
        %v1447 = vadd.f32 %v1398, %v1446
        %v1448 = vpop.f32.mrf.mxu0
        %v1449 = vadd.f32 %v1400, %v1448
        %1450 = vmatmul.bf16.gmra.mxu0 %v874
        %v1451 = vpop.f32.mrf.mxu0
        %v1452 = vadd.f32 %v1403, %v1451
        %v1453 = vpop.f32.mrf.mxu0
        %v1454 = vadd.f32 %v1405, %v1453
        %1455 = vmatmul.bf16.gmra.mxu0 %v878
        %v1456 = vpop.f32.mrf.mxu0
        %v1457 = vadd.f32 %v1408, %v1456
        %v1458 = vpop.f32.mrf.mxu0
        %v1459 = vadd.f32 %v1410, %v1458
        %1460 = vmatmul.bf16.gmra.mxu0 %v882
        %v1461 = vpop.f32.mrf.mxu0
        %v1462 = vadd.f32 %v1413, %v1461
        %v1463 = vpop.f32.mrf.mxu0
        %v1464 = vadd.f32 %v1415, %v1463
        %1465 = vmatmul.bf16.gmra.mxu0 %v886
        %v1466 = vpop.f32.mrf.mxu0
        %v1467 = vadd.f32 %v1418, %v1466
        %v1468 = vpop.f32.mrf.mxu0
        %v1469 = vadd.f32 %v1420, %v1468
        %1470 = vmatmul.bf16.gmra.mxu0 %v890
        %v1471 = vpop.f32.mrf.mxu0
        %v1472 = vadd.f32 %v1423, %v1471
        %v1473 = vpop.f32.mrf.mxu0
        %v1474 = vadd.f32 %v1425, %v1473
        %1475 = vmatmul.bf16.gmra.mxu0 %v894
        %v1476 = vpop.f32.mrf.mxu0
        %v1477 = vadd.f32 %v1428, %v1476
        %v1478 = vpop.f32.mrf.mxu0
        %v1479 = vadd.f32 %v1430, %v1478
        %1480 = vdwg.mxu0
        %1481 = vmatpush.bf16.msra.mxu0 %v1172
        %1482 = vmatpush.bf16.msra.mxu0 %v1170
        %1483 = vmatpush.bf16.msra.mxu0 %v1168
        %1484 = vmatpush.bf16.msra.mxu0 %v1166
        %1485 = vmatpush.bf16.msra.mxu0 %v1164
        %1486 = vmatpush.bf16.msra.mxu0 %v1162
        %1487 = vmatpush.bf16.msra.mxu0 %v1160
        %1488 = vmatpush.bf16.msra.mxu0 %v1158
        %1489 = vmatmul.bf16.gmra.mxu0 %v863
        %v1490 = vpop.f32.mrf.mxu0
        %v1491 = vadd.f32 %v962, %v1490
        %v1492 = vpop.f32.mrf.mxu0
        %v1493 = vadd.f32 %v962, %v1492
        %1494 = vmatmul.bf16.gmra.mxu0 %v867
        %v1495 = vpop.f32.mrf.mxu0
        %v1496 = vadd.f32 %v962, %v1495
        %v1497 = vpop.f32.mrf.mxu0
        %v1498 = vadd.f32 %v962, %v1497
        %1499 = vmatmul.bf16.gmra.mxu0 %v871
        %v1500 = vpop.f32.mrf.mxu0
        %v1501 = vadd.f32 %v962, %v1500
        %v1502 = vpop.f32.mrf.mxu0
        %v1503 = vadd.f32 %v962, %v1502
        %1504 = vmatmul.bf16.gmra.mxu0 %v875
        %v1505 = vpop.f32.mrf.mxu0
        %v1506 = vadd.f32 %v962, %v1505
        %v1507 = vpop.f32.mrf.mxu0
        %v1508 = vadd.f32 %v962, %v1507
        %1509 = vmatmul.bf16.gmra.mxu0 %v879
        %v1510 = vpop.f32.mrf.mxu0
        %v1511 = vadd.f32 %v962, %v1510
        %v1512 = vpop.f32.mrf.mxu0
        %v1513 = vadd.f32 %v962, %v1512
        %1514 = vmatmul.bf16.gmra.mxu0 %v883
        %v1515 = vpop.f32.mrf.mxu0
        %v1516 = vadd.f32 %v962, %v1515
        %v1517 = vpop.f32.mrf.mxu0
        %v1518 = vadd.f32 %v962, %v1517
        %1519 = vmatmul.bf16.gmra.mxu0 %v887
        %v1520 = vpop.f32.mrf.mxu0
        %v1521 = vadd.f32 %v962, %v1520
        %v1522 = vpop.f32.mrf.mxu0
        %v1523 = vadd.f32 %v962, %v1522
        %1524 = vmatmul.bf16.gmra.mxu0 %v891
        %v1525 = vpop.f32.mrf.mxu0
        %v1526 = vadd.f32 %v962, %v1525
        %v1527 = vpop.f32.mrf.mxu0
        %v1528 = vadd.f32 %v962, %v1527
        %1529 = vdwg.mxu0
        %1530 = vmatpush.bf16.msra.mxu0 %v1188
        %1531 = vmatpush.bf16.msra.mxu0 %v1186
        %1532 = vmatpush.bf16.msra.mxu0 %v1184
        %1533 = vmatpush.bf16.msra.mxu0 %v1182
        %1534 = vmatpush.bf16.msra.mxu0 %v1180
        %1535 = vmatpush.bf16.msra.mxu0 %v1178
        %1536 = vmatpush.bf16.msra.mxu0 %v1176
        %1537 = vmatpush.bf16.msra.mxu0 %v1174
        %1538 = vmatmul.bf16.gmra.mxu0 %v864
        %v1539 = vpop.f32.mrf.mxu0
        %v1540 = vadd.f32 %v1491, %v1539
        %v1541 = vpop.f32.mrf.mxu0
        %v1542 = vadd.f32 %v1493, %v1541
        %1543 = vmatmul.bf16.gmra.mxu0 %v868
        %v1544 = vpop.f32.mrf.mxu0
        %v1545 = vadd.f32 %v1496, %v1544
        %v1546 = vpop.f32.mrf.mxu0
        %v1547 = vadd.f32 %v1498, %v1546
        %1548 = vmatmul.bf16.gmra.mxu0 %v872
        %v1549 = vpop.f32.mrf.mxu0
        %v1550 = vadd.f32 %v1501, %v1549
        %v1551 = vpop.f32.mrf.mxu0
        %v1552 = vadd.f32 %v1503, %v1551
        %1553 = vmatmul.bf16.gmra.mxu0 %v876
        %v1554 = vpop.f32.mrf.mxu0
        %v1555 = vadd.f32 %v1506, %v1554
        %v1556 = vpop.f32.mrf.mxu0
        %v1557 = vadd.f32 %v1508, %v1556
        %1558 = vmatmul.bf16.gmra.mxu0 %v880
        %v1559 = vpop.f32.mrf.mxu0
        %v1560 = vadd.f32 %v1511, %v1559
        %v1561 = vpop.f32.mrf.mxu0
        %v1562 = vadd.f32 %v1513, %v1561
        %1563 = vmatmul.bf16.gmra.mxu0 %v884
        %v1564 = vpop.f32.mrf.mxu0
        %v1565 = vadd.f32 %v1516, %v1564
        %v1566 = vpop.f32.mrf.mxu0
        %v1567 = vadd.f32 %v1518, %v1566
        %1568 = vmatmul.bf16.gmra.mxu0 %v888
        %v1569 = vpop.f32.mrf.mxu0
        %v1570 = vadd.f32 %v1521, %v1569
        %v1571 = vpop.f32.mrf.mxu0
        %v1572 = vadd.f32 %v1523, %v1571
        %1573 = vmatmul.bf16.gmra.mxu0 %v892
        %v1574 = vpop.f32.mrf.mxu0
        %v1575 = vadd.f32 %v1526, %v1574
        %v1576 = vpop.f32.mrf.mxu0
        %v1577 = vadd.f32 %v1528, %v1576
        %1578 = vdwg.mxu0
        %1579 = vmatpush.bf16.msra.mxu0 %v1204
        %1580 = vmatpush.bf16.msra.mxu0 %v1202
        %1581 = vmatpush.bf16.msra.mxu0 %v1200
        %1582 = vmatpush.bf16.msra.mxu0 %v1198
        %1583 = vmatpush.bf16.msra.mxu0 %v1196
        %1584 = vmatpush.bf16.msra.mxu0 %v1194
        %1585 = vmatpush.bf16.msra.mxu0 %v1192
        %1586 = vmatpush.bf16.msra.mxu0 %v1190
        %1587 = vmatmul.bf16.gmra.mxu0 %v865
        %v1588 = vpop.f32.mrf.mxu0
        %v1589 = vadd.f32 %v1540, %v1588
        %v1590 = vpop.f32.mrf.mxu0
        %v1591 = vadd.f32 %v1542, %v1590
        %1592 = vmatmul.bf16.gmra.mxu0 %v869
        %v1593 = vpop.f32.mrf.mxu0
        %v1594 = vadd.f32 %v1545, %v1593
        %v1595 = vpop.f32.mrf.mxu0
        %v1596 = vadd.f32 %v1547, %v1595
        %1597 = vmatmul.bf16.gmra.mxu0 %v873
        %v1598 = vpop.f32.mrf.mxu0
        %v1599 = vadd.f32 %v1550, %v1598
        %v1600 = vpop.f32.mrf.mxu0
        %v1601 = vadd.f32 %v1552, %v1600
        %1602 = vmatmul.bf16.gmra.mxu0 %v877
        %v1603 = vpop.f32.mrf.mxu0
        %v1604 = vadd.f32 %v1555, %v1603
        %v1605 = vpop.f32.mrf.mxu0
        %v1606 = vadd.f32 %v1557, %v1605
        %1607 = vmatmul.bf16.gmra.mxu0 %v881
        %v1608 = vpop.f32.mrf.mxu0
        %v1609 = vadd.f32 %v1560, %v1608
        %v1610 = vpop.f32.mrf.mxu0
        %v1611 = vadd.f32 %v1562, %v1610
        %1612 = vmatmul.bf16.gmra.mxu0 %v885
        %v1613 = vpop.f32.mrf.mxu0
        %v1614 = vadd.f32 %v1565, %v1613
        %v1615 = vpop.f32.mrf.mxu0
        %v1616 = vadd.f32 %v1567, %v1615
        %1617 = vmatmul.bf16.gmra.mxu0 %v889
        %v1618 = vpop.f32.mrf.mxu0
        %v1619 = vadd.f32 %v1570, %v1618
        %v1620 = vpop.f32.mrf.mxu0
        %v1621 = vadd.f32 %v1572, %v1620
        %1622 = vmatmul.bf16.gmra.mxu0 %v893
        %v1623 = vpop.f32.mrf.mxu0
        %v1624 = vadd.f32 %v1575, %v1623
        %v1625 = vpop.f32.mrf.mxu0
        %v1626 = vadd.f32 %v1577, %v1625
        %1627 = vdwg.mxu0
        %1628 = vmatpush.bf16.msra.mxu0 %v1220
        %1629 = vmatpush.bf16.msra.mxu0 %v1218
        %1630 = vmatpush.bf16.msra.mxu0 %v1216
        %1631 = vmatpush.bf16.msra.mxu0 %v1214
        %1632 = vmatpush.bf16.msra.mxu0 %v1212
        %1633 = vmatpush.bf16.msra.mxu0 %v1210
        %1634 = vmatpush.bf16.msra.mxu0 %v1208
        %1635 = vmatpush.bf16.msra.mxu0 %v1206
        %1636 = vmatmul.bf16.gmra.mxu0 %v866
        %v1637 = vpop.f32.mrf.mxu0
        %v1638 = vadd.f32 %v1589, %v1637
        %v1639 = vpop.f32.mrf.mxu0
        %v1640 = vadd.f32 %v1591, %v1639
        %1641 = vmatmul.bf16.gmra.mxu0 %v870
        %v1642 = vpop.f32.mrf.mxu0
        %v1643 = vadd.f32 %v1594, %v1642
        %v1644 = vpop.f32.mrf.mxu0
        %v1645 = vadd.f32 %v1596, %v1644
        %1646 = vmatmul.bf16.gmra.mxu0 %v874
        %v1647 = vpop.f32.mrf.mxu0
        %v1648 = vadd.f32 %v1599, %v1647
        %v1649 = vpop.f32.mrf.mxu0
        %v1650 = vadd.f32 %v1601, %v1649
        %1651 = vmatmul.bf16.gmra.mxu0 %v878
        %v1652 = vpop.f32.mrf.mxu0
        %v1653 = vadd.f32 %v1604, %v1652
        %v1654 = vpop.f32.mrf.mxu0
        %v1655 = vadd.f32 %v1606, %v1654
        %1656 = vmatmul.bf16.gmra.mxu0 %v882
        %v1657 = vpop.f32.mrf.mxu0
        %v1658 = vadd.f32 %v1609, %v1657
        %v1659 = vpop.f32.mrf.mxu0
        %v1660 = vadd.f32 %v1611, %v1659
        %1661 = vmatmul.bf16.gmra.mxu0 %v886
        %v1662 = vpop.f32.mrf.mxu0
        %v1663 = vadd.f32 %v1614, %v1662
        %v1664 = vpop.f32.mrf.mxu0
        %v1665 = vadd.f32 %v1616, %v1664
        %1666 = vmatmul.bf16.gmra.mxu0 %v890
        %v1667 = vpop.f32.mrf.mxu0
        %v1668 = vadd.f32 %v1619, %v1667
        %v1669 = vpop.f32.mrf.mxu0
        %v1670 = vadd.f32 %v1621, %v1669
        %1671 = vmatmul.bf16.gmra.mxu0 %v894
        %v1672 = vpop.f32.mrf.mxu0
        %v1673 = vadd.f32 %v1624, %v1672
        %v1674 = vpop.f32.mrf.mxu0
        %v1675 = vadd.f32 %v1626, %v1674
        %1676 = vdwg.mxu0
        %v1677 = vmax.f32 %v1442, 0.0
        %v1678 = vmax.f32 %v1638, 0.0
        %v1679 = vmax.f32 %v1444, 0.0
        %v1680 = vmax.f32 %v1640, 0.0
        %v1681 = vmax.f32 %v1447, 0.0
        %v1682 = vmax.f32 %v1643, 0.0
        %v1683 = vmax.f32 %v1449, 0.0
        %v1684 = vmax.f32 %v1645, 0.0
        %v1685 = vmax.f32 %v1452, 0.0
        %v1686 = vmax.f32 %v1648, 0.0
        %v1687 = vmax.f32 %v1454, 0.0
        %v1688 = vmax.f32 %v1650, 0.0
        %v1689 = vmax.f32 %v1457, 0.0
        %v1690 = vmax.f32 %v1653, 0.0
        %v1691 = vmax.f32 %v1459, 0.0
        %v1692 = vmax.f32 %v1655, 0.0
        %v1693 = vmax.f32 %v1462, 0.0
        %v1694 = vmax.f32 %v1658, 0.0
        %v1695 = vmax.f32 %v1464, 0.0
        %v1696 = vmax.f32 %v1660, 0.0
        %v1697 = vmax.f32 %v1467, 0.0
        %v1698 = vmax.f32 %v1663, 0.0
        %v1699 = vmax.f32 %v1469, 0.0
        %v1700 = vmax.f32 %v1665, 0.0
        %v1701 = vmax.f32 %v1472, 0.0
        %v1702 = vmax.f32 %v1668, 0.0
        %v1703 = vmax.f32 %v1474, 0.0
        %v1704 = vmax.f32 %v1670, 0.0
        %v1705 = vmax.f32 %v1477, 0.0
        %v1706 = vmax.f32 %v1673, 0.0
        %v1707 = vmax.f32 %v1479, 0.0
        %v1708 = vmax.f32 %v1675, 0.0
        %v1709 = vpack.c.bf16 %v1679, %v1677
        %v1710 = vpack.c.bf16 %v1680, %v1678
        %v1711 = vpack.c.bf16 %v1683, %v1681
        %v1712 = vpack.c.bf16 %v1684, %v1682
        %v1713 = vpack.c.bf16 %v1687, %v1685
        %v1714 = vpack.c.bf16 %v1688, %v1686
        %v1715 = vpack.c.bf16 %v1691, %v1689
        %v1716 = vpack.c.bf16 %v1692, %v1690
        %v1717 = vpack.c.bf16 %v1695, %v1693
        %v1718 = vpack.c.bf16 %v1696, %v1694
        %v1719 = vpack.c.bf16 %v1699, %v1697
        %v1720 = vpack.c.bf16 %v1700, %v1698
        %v1721 = vpack.c.bf16 %v1703, %v1701
        %v1722 = vpack.c.bf16 %v1704, %v1702
        %v1723 = vpack.c.bf16 %v1707, %v1705
        %v1724 = vpack.c.bf16 %v1708, %v1706
        %v1725 = vld [vmem:[%s5] sm:$0xf]
        %v1726 = vld [vmem:[%s5 + $0x4] sm:$0xf]
        %v1727 = vld [vmem:[%s5 + $0x8] sm:$0xf]
        %v1728 = vld [vmem:[%s5 + $0xc] sm:$0xf]
        %v1729 = vld [vmem:[%s5 + $0x10] sm:$0xf]
        %v1730 = vld [vmem:[%s5 + $0x14] sm:$0xf]
        %v1731 = vld [vmem:[%s5 + $0x18] sm:$0xf]
        %v1732 = vld [vmem:[%s5 + $0x1c] sm:$0xf]
        %v1733 = vld [vmem:[%s5 + $0x20] sm:$0xf]
        %v1734 = vld [vmem:[%s5 + $0x24] sm:$0xf]
        %v1735 = vld [vmem:[%s5 + $0x28] sm:$0xf]
        %v1736 = vld [vmem:[%s5 + $0x2c] sm:$0xf]
        %v1737 = vld [vmem:[%s5 + $0x30] sm:$0xf]
        %v1738 = vld [vmem:[%s5 + $0x34] sm:$0xf]
        %v1739 = vld [vmem:[%s5 + $0x38] sm:$0xf]
        %v1740 = vld [vmem:[%s5 + $0x3c] sm:$0xf]
        %v1741 = vld [vmem:[%s5 + $0x40] sm:$0xf]
        %v1742 = vld [vmem:[%s5 + $0x44] sm:$0xf]
        %v1743 = vld [vmem:[%s5 + $0x48] sm:$0xf]
        %v1744 = vld [vmem:[%s5 + $0x4c] sm:$0xf]
        %v1745 = vld [vmem:[%s5 + $0x50] sm:$0xf]
        %v1746 = vld [vmem:[%s5 + $0x54] sm:$0xf]
        %v1747 = vld [vmem:[%s5 + $0x58] sm:$0xf]
        %v1748 = vld [vmem:[%s5 + $0x5c] sm:$0xf]
        %v1749 = vld [vmem:[%s5 + $0x60] sm:$0xf]
        %v1750 = vld [vmem:[%s5 + $0x64] sm:$0xf]
        %v1751 = vld [vmem:[%s5 + $0x68] sm:$0xf]
        %v1752 = vld [vmem:[%s5 + $0x6c] sm:$0xf]
        %v1753 = vld [vmem:[%s5 + $0x70] sm:$0xf]
        %v1754 = vld [vmem:[%s5 + $0x74] sm:$0xf]
        %v1755 = vld [vmem:[%s5 + $0x78] sm:$0xf]
        %v1756 = vld [vmem:[%s5 + $0x7c] sm:$0xf]
        %v1757 = vld [vmem:[%s6] sm:$0x1]
        %v1759 = vperm.slane %v1757, 0
        %v1793 = vunpack.c.l.b16 %v1725
        %v1794 = vunpack.c.l.b16 %v1726
        %v1795 = vunpack.c.l.b16 %v1727
        %v1796 = vunpack.c.l.b16 %v1728
        %v1797 = vunpack.c.l.b16 %v1729
        %v1798 = vunpack.c.l.b16 %v1730
        %v1799 = vunpack.c.l.b16 %v1731
        %v1800 = vunpack.c.l.b16 %v1732
        %v1801 = vunpack.c.l.b16 %v1733
        %v1802 = vunpack.c.l.b16 %v1734
        %v1803 = vunpack.c.l.b16 %v1735
        %v1804 = vunpack.c.l.b16 %v1736
        %v1805 = vunpack.c.l.b16 %v1737
        %v1806 = vunpack.c.l.b16 %v1738
        %v1807 = vunpack.c.l.b16 %v1739
        %v1808 = vunpack.c.l.b16 %v1740
        %v1809 = vunpack.c.l.b16 %v1741
        %v1810 = vunpack.c.l.b16 %v1742
        %v1811 = vunpack.c.l.b16 %v1743
        %v1812 = vunpack.c.l.b16 %v1744
        %v1813 = vunpack.c.l.b16 %v1745
        %v1814 = vunpack.c.l.b16 %v1746
        %v1815 = vunpack.c.l.b16 %v1747
        %v1816 = vunpack.c.l.b16 %v1748
        %v1817 = vunpack.c.l.b16 %v1749
        %v1818 = vunpack.c.l.b16 %v1750
        %v1819 = vunpack.c.l.b16 %v1751
        %v1820 = vunpack.c.l.b16 %v1752
        %v1821 = vunpack.c.l.b16 %v1753
        %v1822 = vunpack.c.l.b16 %v1754
        %v1823 = vunpack.c.l.b16 %v1755
        %v1824 = vunpack.c.l.b16 %v1756
        %v1825 = vpack.c.b16 %v1794, %v1793
        %v1826 = vpack.c.b16 %v1796, %v1795
        %v1827 = vpack.c.b16 %v1798, %v1797
        %v1828 = vpack.c.b16 %v1800, %v1799
        %v1829 = vpack.c.b16 %v1802, %v1801
        %v1830 = vpack.c.b16 %v1804, %v1803
        %v1831 = vpack.c.b16 %v1806, %v1805
        %v1832 = vpack.c.b16 %v1808, %v1807
        %v1833 = vpack.c.b16 %v1810, %v1809
        %v1834 = vpack.c.b16 %v1812, %v1811
        %v1835 = vpack.c.b16 %v1814, %v1813
        %v1836 = vpack.c.b16 %v1816, %v1815
        %v1837 = vpack.c.b16 %v1818, %v1817
        %v1838 = vpack.c.b16 %v1820, %v1819
        %v1839 = vpack.c.b16 %v1822, %v1821
        %v1840 = vpack.c.b16 %v1824, %v1823
        %1857 = vmatpush.bf16.msra.mxu0 %v1832
        %1858 = vmatpush.bf16.msra.mxu0 %v1831
        %1859 = vmatpush.bf16.msra.mxu0 %v1830
        %1860 = vmatpush.bf16.msra.mxu0 %v1829
        %1861 = vmatpush.bf16.msra.mxu0 %v1828
        %1862 = vmatpush.bf16.msra.mxu0 %v1827
        %1863 = vmatpush.bf16.msra.mxu0 %v1826
        %1864 = vmatpush.bf16.msra.mxu0 %v1825
        %1865 = vmatmul.bf16.gmra.mxu0 %v1709
        %v1866 = vpop.f32.mrf.mxu0
        %v1867 = vadd.f32 %v1759, %v1866
        %v1868 = vpop.f32.mrf.mxu0
        %v1869 = vadd.f32 %v1759, %v1868
        %1870 = vmatmul.bf16.gmra.mxu0 %v1711
        %v1871 = vpop.f32.mrf.mxu0
        %v1872 = vadd.f32 %v1759, %v1871
        %v1873 = vpop.f32.mrf.mxu0
        %v1874 = vadd.f32 %v1759, %v1873
        %1875 = vmatmul.bf16.gmra.mxu0 %v1713
        %v1876 = vpop.f32.mrf.mxu0
        %v1877 = vadd.f32 %v1759, %v1876
        %v1878 = vpop.f32.mrf.mxu0
        %v1879 = vadd.f32 %v1759, %v1878
        %1880 = vmatmul.bf16.gmra.mxu0 %v1715
        %v1881 = vpop.f32.mrf.mxu0
        %v1882 = vadd.f32 %v1759, %v1881
        %v1883 = vpop.f32.mrf.mxu0
        %v1884 = vadd.f32 %v1759, %v1883
        %1885 = vmatmul.bf16.gmra.mxu0 %v1717
        %v1886 = vpop.f32.mrf.mxu0
        %v1887 = vadd.f32 %v1759, %v1886
        %v1888 = vpop.f32.mrf.mxu0
        %v1889 = vadd.f32 %v1759, %v1888
        %1890 = vmatmul.bf16.gmra.mxu0 %v1719
        %v1891 = vpop.f32.mrf.mxu0
        %v1892 = vadd.f32 %v1759, %v1891
        %v1893 = vpop.f32.mrf.mxu0
        %v1894 = vadd.f32 %v1759, %v1893
        %1895 = vmatmul.bf16.gmra.mxu0 %v1721
        %v1896 = vpop.f32.mrf.mxu0
        %v1897 = vadd.f32 %v1759, %v1896
        %v1898 = vpop.f32.mrf.mxu0
        %v1899 = vadd.f32 %v1759, %v1898
        %1900 = vmatmul.bf16.gmra.mxu0 %v1723
        %v1901 = vpop.f32.mrf.mxu0
        %v1902 = vadd.f32 %v1759, %v1901
        %v1903 = vpop.f32.mrf.mxu0
        %v1904 = vadd.f32 %v1759, %v1903
        %1905 = vdwg.mxu0
        %1906 = vmatpush.bf16.msra.mxu0 %v1840
        %1907 = vmatpush.bf16.msra.mxu0 %v1839
        %1908 = vmatpush.bf16.msra.mxu0 %v1838
        %1909 = vmatpush.bf16.msra.mxu0 %v1837
        %1910 = vmatpush.bf16.msra.mxu0 %v1836
        %1911 = vmatpush.bf16.msra.mxu0 %v1835
        %1912 = vmatpush.bf16.msra.mxu0 %v1834
        %1913 = vmatpush.bf16.msra.mxu0 %v1833
        %1914 = vmatmul.bf16.gmra.mxu0 %v1710
        %v1915 = vpop.f32.mrf.mxu0
        %v1916 = vadd.f32 %v1867, %v1915
        %v1917 = vpop.f32.mrf.mxu0
        %v1918 = vadd.f32 %v1869, %v1917
        %1919 = vmatmul.bf16.gmra.mxu0 %v1712
        %v1920 = vpop.f32.mrf.mxu0
        %v1921 = vadd.f32 %v1872, %v1920
        %v1922 = vpop.f32.mrf.mxu0
        %v1923 = vadd.f32 %v1874, %v1922
        %1924 = vmatmul.bf16.gmra.mxu0 %v1714
        %v1925 = vpop.f32.mrf.mxu0
        %v1926 = vadd.f32 %v1877, %v1925
        %v1927 = vpop.f32.mrf.mxu0
        %v1928 = vadd.f32 %v1879, %v1927
        %1929 = vmatmul.bf16.gmra.mxu0 %v1716
        %v1930 = vpop.f32.mrf.mxu0
        %v1931 = vadd.f32 %v1882, %v1930
        %v1932 = vpop.f32.mrf.mxu0
        %v1933 = vadd.f32 %v1884, %v1932
        %1934 = vmatmul.bf16.gmra.mxu0 %v1718
        %v1935 = vpop.f32.mrf.mxu0
        %v1936 = vadd.f32 %v1887, %v1935
        %v1937 = vpop.f32.mrf.mxu0
        %v1938 = vadd.f32 %v1889, %v1937
        %1939 = vmatmul.bf16.gmra.mxu0 %v1720
        %v1940 = vpop.f32.mrf.mxu0
        %v1941 = vadd.f32 %v1892, %v1940
        %v1942 = vpop.f32.mrf.mxu0
        %v1943 = vadd.f32 %v1894, %v1942
        %1944 = vmatmul.bf16.gmra.mxu0 %v1722
        %v1945 = vpop.f32.mrf.mxu0
        %v1946 = vadd.f32 %v1897, %v1945
        %v1947 = vpop.f32.mrf.mxu0
        %v1948 = vadd.f32 %v1899, %v1947
        %1949 = vmatmul.bf16.gmra.mxu0 %v1724
        %v1950 = vpop.f32.mrf.mxu0
        %v1951 = vadd.f32 %v1902, %v1950
        %v1952 = vpop.f32.mrf.mxu0
        %v1953 = vadd.f32 %v1904, %v1952
        %1954 = vdwg.mxu0
        %v1955 = vmax.f32 %v1916, 0.0
        %v1956 = vmax.f32 %v1918, 0.0
        %v1957 = vmax.f32 %v1921, 0.0
        %v1958 = vmax.f32 %v1923, 0.0
        %v1959 = vmax.f32 %v1926, 0.0
        %v1960 = vmax.f32 %v1928, 0.0
        %v1961 = vmax.f32 %v1931, 0.0
        %v1962 = vmax.f32 %v1933, 0.0
        %v1963 = vmax.f32 %v1936, 0.0
        %v1964 = vmax.f32 %v1938, 0.0
        %v1965 = vmax.f32 %v1941, 0.0
        %v1966 = vmax.f32 %v1943, 0.0
        %v1967 = vmax.f32 %v1946, 0.0
        %v1968 = vmax.f32 %v1948, 0.0
        %v1969 = vmax.f32 %v1951, 0.0
        %v1970 = vmax.f32 %v1953, 0.0
        %v1971 = vpack.c.bf16 %v1956, %v1955
        %v1972 = vpack.c.bf16 %v1958, %v1957
        %v1973 = vpack.c.bf16 %v1960, %v1959
        %v1974 = vpack.c.bf16 %v1962, %v1961
        %v1975 = vpack.c.bf16 %v1964, %v1963
        %v1976 = vpack.c.bf16 %v1966, %v1965
        %v1977 = vpack.c.bf16 %v1968, %v1967
        %v1978 = vpack.c.bf16 %v1970, %v1969
        %v1979 = vld [vmem:[%s7] sm:$0xf]
        %v1980 = vld [vmem:[%s7 + $0x4] sm:$0xf]
        %v1981 = vld [vmem:[%s7 + $0x8] sm:$0xf]
        %v1982 = vld [vmem:[%s7 + $0xc] sm:$0xf]
        %v1983 = vld [vmem:[%s7 + $0x10] sm:$0xf]
        %v1984 = vld [vmem:[%s7 + $0x14] sm:$0xf]
        %v1985 = vld [vmem:[%s7 + $0x18] sm:$0xf]
        %v1986 = vld [vmem:[%s7 + $0x1c] sm:$0xf]
        %v1987 = vld [vmem:[%s7 + $0x20] sm:$0xf]
        %v1988 = vld [vmem:[%s7 + $0x24] sm:$0xf]
        %v1989 = vld [vmem:[%s7 + $0x28] sm:$0xf]
        %v1990 = vld [vmem:[%s7 + $0x2c] sm:$0xf]
        %v1991 = vld [vmem:[%s7 + $0x30] sm:$0xf]
        %v1992 = vld [vmem:[%s7 + $0x34] sm:$0xf]
        %v1993 = vld [vmem:[%s7 + $0x38] sm:$0xf]
        %v1994 = vld [vmem:[%s7 + $0x3c] sm:$0xf]
        %v1995 = vld [vmem:[%s8] sm:$0x1]
        %v1997 = vperm.slane %v1995, 0
        %v2015 = vunpack.c.l.b16 %v1979
        %v2016 = vunpack.c.l.b16 %v1980
        %v2017 = vunpack.c.l.b16 %v1981
        %v2018 = vunpack.c.l.b16 %v1982
        %v2019 = vunpack.c.l.b16 %v1983
        %v2020 = vunpack.c.l.b16 %v1984
        %v2021 = vunpack.c.l.b16 %v1985
        %v2022 = vunpack.c.l.b16 %v1986
        %v2023 = vunpack.c.l.b16 %v1987
        %v2024 = vunpack.c.l.b16 %v1988
        %v2025 = vunpack.c.l.b16 %v1989
        %v2026 = vunpack.c.l.b16 %v1990
        %v2027 = vunpack.c.l.b16 %v1991
        %v2028 = vunpack.c.l.b16 %v1992
        %v2029 = vunpack.c.l.b16 %v1993
        %v2030 = vunpack.c.l.b16 %v1994
        %v2031 = vpack.c.b16 %v2016, %v2015
        %v2032 = vpack.c.b16 %v2018, %v2017
        %v2033 = vpack.c.b16 %v2020, %v2019
        %v2034 = vpack.c.b16 %v2022, %v2021
        %v2035 = vpack.c.b16 %v2024, %v2023
        %v2036 = vpack.c.b16 %v2026, %v2025
        %v2037 = vpack.c.b16 %v2028, %v2027
        %v2038 = vpack.c.b16 %v2030, %v2029
        %2047 = vmatpush.bf16.msra.mxu0 %v2038
        %2048 = vmatpush.bf16.msra.mxu0 %v2037
        %2049 = vmatpush.bf16.msra.mxu0 %v2036
        %2050 = vmatpush.bf16.msra.mxu0 %v2035
        %2051 = vmatpush.bf16.msra.mxu0 %v2034
        %2052 = vmatpush.bf16.msra.mxu0 %v2033
        %2053 = vmatpush.bf16.msra.mxu0 %v2032
        %2054 = vmatpush.bf16.msra.mxu0 %v2031
        %2055 = vmatmul.bf16.gmra.mxu0 %v1971
        %v2056 = vpop.f32.mrf.mxu0
        %v2057 = vadd.f32 %v1997, %v2056
        %v2058 = vpop.f32.mrf.mxu0
        %v2059 = vadd.f32 %v1997, %v2058
        %2060 = vmatmul.bf16.gmra.mxu0 %v1972
        %v2061 = vpop.f32.mrf.mxu0
        %v2062 = vadd.f32 %v1997, %v2061
        %v2063 = vpop.f32.mrf.mxu0
        %v2064 = vadd.f32 %v1997, %v2063
        %2065 = vmatmul.bf16.gmra.mxu0 %v1973
        %v2066 = vpop.f32.mrf.mxu0
        %v2067 = vadd.f32 %v1997, %v2066
        %v2068 = vpop.f32.mrf.mxu0
        %v2069 = vadd.f32 %v1997, %v2068
        %2070 = vmatmul.bf16.gmra.mxu0 %v1974
        %v2071 = vpop.f32.mrf.mxu0
        %v2072 = vadd.f32 %v1997, %v2071
        %v2073 = vpop.f32.mrf.mxu0
        %v2074 = vadd.f32 %v1997, %v2073
        %2075 = vmatmul.bf16.gmra.mxu0 %v1975
        %v2076 = vpop.f32.mrf.mxu0
        %v2077 = vadd.f32 %v1997, %v2076
        %v2078 = vpop.f32.mrf.mxu0
        %v2079 = vadd.f32 %v1997, %v2078
        %2080 = vmatmul.bf16.gmra.mxu0 %v1976
        %v2081 = vpop.f32.mrf.mxu0
        %v2082 = vadd.f32 %v1997, %v2081
        %v2083 = vpop.f32.mrf.mxu0
        %v2084 = vadd.f32 %v1997, %v2083
        %2085 = vmatmul.bf16.gmra.mxu0 %v1977
        %v2086 = vpop.f32.mrf.mxu0
        %v2087 = vadd.f32 %v1997, %v2086
        %v2088 = vpop.f32.mrf.mxu0
        %v2089 = vadd.f32 %v1997, %v2088
        %2090 = vmatmul.bf16.gmra.mxu0 %v1978
        %v2091 = vpop.f32.mrf.mxu0
        %v2092 = vadd.f32 %v1997, %v2091
        %v2093 = vpop.f32.mrf.mxu0
        %v2094 = vadd.f32 %v1997, %v2093
        %2095 = vdwg.mxu0
        %v2096 = vmax.f32 %v2057, 0.0
        %v2097 = vmax.f32 %v2059, 0.0
        %v2098 = vmax.f32 %v2062, 0.0
        %v2099 = vmax.f32 %v2064, 0.0
        %v2100 = vmax.f32 %v2067, 0.0
        %v2101 = vmax.f32 %v2069, 0.0
        %v2102 = vmax.f32 %v2072, 0.0
        %v2103 = vmax.f32 %v2074, 0.0
        %v2104 = vmax.f32 %v2077, 0.0
        %v2105 = vmax.f32 %v2079, 0.0
        %v2106 = vmax.f32 %v2082, 0.0
        %v2107 = vmax.f32 %v2084, 0.0
        %v2108 = vmax.f32 %v2087, 0.0
        %v2109 = vmax.f32 %v2089, 0.0
        %v2110 = vmax.f32 %v2092, 0.0
        %v2111 = vmax.f32 %v2094, 0.0
        %v2112 = vpack.c.bf16 %v2097, %v2096
        %v2113 = vpack.c.bf16 %v2099, %v2098
        %v2114 = vpack.c.bf16 %v2101, %v2100
        %v2115 = vpack.c.bf16 %v2103, %v2102
        %v2116 = vpack.c.bf16 %v2105, %v2104
        %v2117 = vpack.c.bf16 %v2107, %v2106
        %v2118 = vpack.c.bf16 %v2109, %v2108
        %v2119 = vpack.c.bf16 %v2111, %v2110
        %v2120 = vld [vmem:[%s9] sm:$0xf]
        %v2121 = vld [vmem:[%s9 + $0x4] sm:$0xf]
        %v2122 = vld [vmem:[%s9 + $0x8] sm:$0xf]
        %v2123 = vld [vmem:[%s9 + $0xc] sm:$0xf]
        %v2124 = vld [vmem:[%s9 + $0x10] sm:$0xf]
        %v2125 = vld [vmem:[%s9 + $0x14] sm:$0xf]
        %v2126 = vld [vmem:[%s9 + $0x18] sm:$0xf]
        %v2127 = vld [vmem:[%s9 + $0x1c] sm:$0xf]
        %v2128 = vld [vmem:[%s10] sm:$0x1]
        %v2130 = vperm.slane %v2128, 0
        %v2140 = vunpack.c.l.b16 %v2120
        %v2141 = vunpack.c.l.b16 %v2121
        %v2142 = vunpack.c.l.b16 %v2122
        %v2143 = vunpack.c.l.b16 %v2123
        %v2144 = vunpack.c.l.b16 %v2124
        %v2145 = vunpack.c.l.b16 %v2125
        %v2146 = vunpack.c.l.b16 %v2126
        %v2147 = vunpack.c.l.b16 %v2127
        %v2148 = vpack.c.b16 %v2141, %v2140
        %v2149 = vpack.c.b16 %v2143, %v2142
        %v2150 = vpack.c.b16 %v2145, %v2144
        %v2151 = vpack.c.b16 %v2147, %v2146
        %vm2156 = vcmask 523264
        %v2158 = vsel %vm2156, %v2112, 0
        %v2161 = vsel %vm2156, %v2113, 0
        %v2164 = vsel %vm2156, %v2114, 0
        %v2167 = vsel %vm2156, %v2115, 0
        %v2170 = vsel %vm2156, %v2116, 0
        %v2173 = vsel %vm2156, %v2117, 0
        %v2176 = vsel %vm2156, %v2118, 0
        %v2179 = vsel %vm2156, %v2119, 0
        %2181 = vmatpush.bf16.msra.mxu0 0
        %2182 = vmatpush.bf16.msra.mxu0 0
        %2183 = vmatpush.bf16.msra.mxu0 0
        %2184 = vmatpush.bf16.msra.mxu0 0
        %2185 = vmatpush.bf16.msra.mxu0 %v2151
        %2186 = vmatpush.bf16.msra.mxu0 %v2150
        %2187 = vmatpush.bf16.msra.mxu0 %v2149
        %2188 = vmatpush.bf16.msra.mxu0 %v2148
        %2189 = vmatmul.bf16.gmra.mxu0 %v2158
        %v2190 = vpop.f32.mrf.mxu0
        %v2191 = vadd.f32 %v2130, %v2190
        %v2192 = vpop.f32.mrf.mxu0
        %v2193 = vadd.f32 %v2130, %v2192
        %2194 = vmatmul.bf16.gmra.mxu0 %v2161
        %v2195 = vpop.f32.mrf.mxu0
        %v2196 = vadd.f32 %v2130, %v2195
        %v2197 = vpop.f32.mrf.mxu0
        %v2198 = vadd.f32 %v2130, %v2197
        %2199 = vmatmul.bf16.gmra.mxu0 %v2164
        %v2200 = vpop.f32.mrf.mxu0
        %v2201 = vadd.f32 %v2130, %v2200
        %v2202 = vpop.f32.mrf.mxu0
        %v2203 = vadd.f32 %v2130, %v2202
        %2204 = vmatmul.bf16.gmra.mxu0 %v2167
        %v2205 = vpop.f32.mrf.mxu0
        %v2206 = vadd.f32 %v2130, %v2205
        %v2207 = vpop.f32.mrf.mxu0
        %v2208 = vadd.f32 %v2130, %v2207
        %2209 = vmatmul.bf16.gmra.mxu0 %v2170
        %v2210 = vpop.f32.mrf.mxu0
        %v2211 = vadd.f32 %v2130, %v2210
        %v2212 = vpop.f32.mrf.mxu0
        %v2213 = vadd.f32 %v2130, %v2212
        %2214 = vmatmul.bf16.gmra.mxu0 %v2173
        %v2215 = vpop.f32.mrf.mxu0
        %v2216 = vadd.f32 %v2130, %v2215
        %v2217 = vpop.f32.mrf.mxu0
        %v2218 = vadd.f32 %v2130, %v2217
        %2219 = vmatmul.bf16.gmra.mxu0 %v2176
        %v2220 = vpop.f32.mrf.mxu0
        %v2221 = vadd.f32 %v2130, %v2220
        %v2222 = vpop.f32.mrf.mxu0
        %v2223 = vadd.f32 %v2130, %v2222
        %2224 = vmatmul.bf16.gmra.mxu0 %v2179
        %v2225 = vpop.f32.mrf.mxu0
        %v2226 = vadd.f32 %v2130, %v2225
        %v2227 = vpop.f32.mrf.mxu0
        %v2228 = vadd.f32 %v2130, %v2227
        %2229 = vdwg.mxu0
        %v2230 = vmax.f32 %v2191, 0.0
        %v2231 = vmax.f32 %v2193, 0.0
        %v2232 = vmax.f32 %v2196, 0.0
        %v2233 = vmax.f32 %v2198, 0.0
        %v2234 = vmax.f32 %v2201, 0.0
        %v2235 = vmax.f32 %v2203, 0.0
        %v2236 = vmax.f32 %v2206, 0.0
        %v2237 = vmax.f32 %v2208, 0.0
        %v2238 = vmax.f32 %v2211, 0.0
        %v2239 = vmax.f32 %v2213, 0.0
        %v2240 = vmax.f32 %v2216, 0.0
        %v2241 = vmax.f32 %v2218, 0.0
        %v2242 = vmax.f32 %v2221, 0.0
        %v2243 = vmax.f32 %v2223, 0.0
        %v2244 = vmax.f32 %v2226, 0.0
        %v2245 = vmax.f32 %v2228, 0.0
        %v2246 = vld [vmem:[%s11] sm:$0x1]
        %v2247 = vunpack.c.l.bf16 %v2246
        %v2248 = vperm.slane %v2247, 0
        %v2249 = vmul.f32 %v2230, %v2248
        %v2250 = vmul.f32 %v2231, %v2248
        %v2251 = vmul.f32 %v2232, %v2248
        %v2252 = vmul.f32 %v2233, %v2248
        %v2253 = vmul.f32 %v2234, %v2248
        %v2254 = vmul.f32 %v2235, %v2248
        %v2255 = vmul.f32 %v2236, %v2248
        %v2256 = vmul.f32 %v2237, %v2248
        %v2257 = vmul.f32 %v2238, %v2248
        %v2258 = vmul.f32 %v2239, %v2248
        %v2259 = vmul.f32 %v2240, %v2248
        %v2260 = vmul.f32 %v2241, %v2248
        %v2261 = vmul.f32 %v2242, %v2248
        %v2262 = vmul.f32 %v2243, %v2248
        %v2263 = vmul.f32 %v2244, %v2248
        %v2264 = vmul.f32 %v2245, %v2248
        %v2265 = vsel %vm578, %v2249, 0.0
        %2266 = vadd.xlane.f32.xlu0 %v2265
        %v2267 = vpop.xlane.xlu0 %2266
        %v2268 = vsel %vm578, %v2250, 0.0
        %2269 = vadd.xlane.f32.xlu0 %v2268
        %v2270 = vpop.xlane.xlu0 %2269
        %v2271 = vsel %vm578, %v2251, 0.0
        %2272 = vadd.xlane.f32.xlu0 %v2271
        %v2273 = vpop.xlane.xlu0 %2272
        %v2274 = vsel %vm578, %v2252, 0.0
        %2275 = vadd.xlane.f32.xlu0 %v2274
        %v2276 = vpop.xlane.xlu0 %2275
        %v2277 = vsel %vm578, %v2253, 0.0
        %2278 = vadd.xlane.f32.xlu0 %v2277
        %v2279 = vpop.xlane.xlu0 %2278
        %v2280 = vsel %vm578, %v2254, 0.0
        %2281 = vadd.xlane.f32.xlu0 %v2280
        %v2282 = vpop.xlane.xlu0 %2281
        %v2283 = vsel %vm578, %v2255, 0.0
        %2284 = vadd.xlane.f32.xlu0 %v2283
        %v2285 = vpop.xlane.xlu0 %2284
        %v2286 = vsel %vm578, %v2256, 0.0
        %2287 = vadd.xlane.f32.xlu0 %v2286
        %v2288 = vpop.xlane.xlu0 %2287
        %v2289 = vsel %vm578, %v2257, 0.0
        %2290 = vadd.xlane.f32.xlu0 %v2289
        %v2291 = vpop.xlane.xlu0 %2290
        %v2292 = vsel %vm578, %v2258, 0.0
        %2293 = vadd.xlane.f32.xlu0 %v2292
        %v2294 = vpop.xlane.xlu0 %2293
        %v2295 = vsel %vm578, %v2259, 0.0
        %2296 = vadd.xlane.f32.xlu0 %v2295
        %v2297 = vpop.xlane.xlu0 %2296
        %v2298 = vsel %vm578, %v2260, 0.0
        %2299 = vadd.xlane.f32.xlu0 %v2298
        %v2300 = vpop.xlane.xlu0 %2299
        %v2301 = vsel %vm578, %v2261, 0.0
        %2302 = vadd.xlane.f32.xlu0 %v2301
        %v2303 = vpop.xlane.xlu0 %2302
        %v2304 = vsel %vm578, %v2262, 0.0
        %2305 = vadd.xlane.f32.xlu0 %v2304
        %v2306 = vpop.xlane.xlu0 %2305
        %v2307 = vsel %vm578, %v2263, 0.0
        %2308 = vadd.xlane.f32.xlu0 %v2307
        %v2309 = vpop.xlane.xlu0 %2308
        %v2310 = vsel %vm578, %v2264, 0.0
        %2311 = vadd.xlane.f32.xlu0 %v2310
        %v2312 = vpop.xlane.xlu0 %2311
        %v2313 = vld [vmem:[#allocation2] sm:$0x1]
        %v2315 = vperm.slane %v2313, 0
        %v2317 = vadd.f32 %v2267, %v2315
        %v2318 = vadd.f32 %v2270, %v2315
        %v2319 = vadd.f32 %v2273, %v2315
        %v2320 = vadd.f32 %v2276, %v2315
        %v2321 = vadd.f32 %v2279, %v2315
        %v2322 = vadd.f32 %v2282, %v2315
        %v2323 = vadd.f32 %v2285, %v2315
        %v2324 = vadd.f32 %v2288, %v2315
        %v2325 = vadd.f32 %v2291, %v2315
        %v2326 = vadd.f32 %v2294, %v2315
        %v2327 = vadd.f32 %v2297, %v2315
        %v2328 = vadd.f32 %v2300, %v2315
        %v2329 = vadd.f32 %v2303, %v2315
        %v2330 = vadd.f32 %v2306, %v2315
        %v2331 = vadd.f32 %v2309, %v2315
        %v2332 = vadd.f32 %v2312, %v2315
        %vm2333 = vcmask 7168
        %2334 = vst.msk [vmem:[%s461] sm:$0xff] %vm2333, %v2317
        %2335 = vst.msk [vmem:[%s461 + $0x8] sm:$0xff] %vm2333, %v2318
        %2336 = vst.msk [vmem:[%s461 + $0x10] sm:$0xff] %vm2333, %v2319
        %2337 = vst.msk [vmem:[%s461 + $0x18] sm:$0xff] %vm2333, %v2320
        %2338 = vst.msk [vmem:[%s461 + $0x20] sm:$0xff] %vm2333, %v2321
        %2339 = vst.msk [vmem:[%s461 + $0x28] sm:$0xff] %vm2333, %v2322
        %2340 = vst.msk [vmem:[%s461 + $0x30] sm:$0xff] %vm2333, %v2323
        %2341 = vst.msk [vmem:[%s461 + $0x38] sm:$0xff] %vm2333, %v2324
        %2342 = vst.msk [vmem:[%s461 + $0x40] sm:$0xff] %vm2333, %v2325
        %2343 = vst.msk [vmem:[%s461 + $0x48] sm:$0xff] %vm2333, %v2326
        %2344 = vst.msk [vmem:[%s461 + $0x50] sm:$0xff] %vm2333, %v2327
        %2345 = vst.msk [vmem:[%s461 + $0x58] sm:$0xff] %vm2333, %v2328
        %2346 = vst.msk [vmem:[%s461 + $0x60] sm:$0xff] %vm2333, %v2329
        %2347 = vst.msk [vmem:[%s461 + $0x68] sm:$0xff] %vm2333, %v2330
        %2348 = vst.msk [vmem:[%s461 + $0x70] sm:$0xff] %vm2333, %v2331
        %2349 = vst.msk [vmem:[%s461 + $0x78] sm:$0xff] %vm2333, %v2332
        %s2350 = smul.u32 16, %s27
        %p2351 = scmp.lt.s32.totalorder %s2350, 31
        %s2352 = scalar_select %p2351, %s2350, 31
        %s2353 = smul.addr %s2352, 8
        %s2354 = scalar_lea.vmem %s13, %s2353
        // Predicated region
        $region77: #{tpu_custom_call.1} parent=71 // pred_check
          %p2355 = pneg %p323
        $region78: #{tpu_custom_call.1} parent=71 // pred_check_branch
          %2357 = sbr.rel (%p2355) target = $region80
        $region79: #{tpu_custom_call.1} parent=71 // pred_region
          %s2358 = smul.u32 16, %s27
        $region80: #{tpu_custom_call.1} parent=71 // pred_fallthru
          _
      $region72: #{tpu_custom_call.1} parent=5 // pred_fallthru
        _
      %p2359 = scmp.le.s32.totalorder 2, %s22
      // Predicated region
      $region81: #{tpu_custom_call.1} parent=5 // pred_check
        %p2360 = pneg %p2359
      $region82: #{tpu_custom_call.1} parent=5 // pred_check_branch
        %2362 = sbr.rel (%p2360) target = $region84
      $region83: #{tpu_custom_call.1} parent=5 // pred_region
        %s2363 = ssub.s32 %s22, 2
        // Predicated region
        $region85: #{tpu_custom_call.1} parent=83 // pred_check
          %p2364 = pneg %p329
        $region86: #{tpu_custom_call.1} parent=83 // pred_check_branch
          %2366 = sbr.rel (%p2364) target = $region88
        $region87: #{tpu_custom_call.1} parent=83 // pred_region
          %s2367 = smul.u32 16, %s28
          %p2368 = scmp.lt.s32.totalorder %s2367, 31
          %s2369 = scalar_select %p2368, %s2367, 31
          %s2370 = smul.addr %s2369, 8
          %s2371 = scalar_lea.vmem %s13, %s2370
        $region88: #{tpu_custom_call.1} parent=83 // pred_fallthru
          _
      $region84: #{tpu_custom_call.1} parent=5 // pred_fallthru
        _
    $region6: #{tpu_custom_call.1} parent=1 // loop_footer
      %s26 = sadd.s32 1, %s22
    $region7: #{tpu_custom_call.1} parent=1 // loop_footer_branch
      %21 = sbr.rel target = $region3
    $region8: #{tpu_custom_call.1} parent=1 // loop_exit
      _
    %2372 = vsyncpa [#allocation4], 1
    %s2373 = scalar_lea.sflag [#allocation4], 1
    %2374 = vsyncpa %s2373, 1

</llo_original>
